<compile_context>
chip_gen: v5e
topology: v5e:2x2
jax: 0.10.0
libtpu: 0.0.40
codegen_flags: <defaults>
</compile_context>

<pallas_src>
import numpy as np
import jax
import jax.numpy as jnp
from jax.experimental import pallas as pl
from jax.experimental.pallas import tpu as pltpu


# VMEM budget for the double-buffered streamed blocks (x tile, attention tile,
# output tile) of the heavier gate kernel.  ~20 MiB + weights + slack stays
# well inside v5e/v6e (128 MiB physical) and v7x (64 MiB physical).
_BLOCK_VMEM_BUDGET = 20 << 20


def _pick_tile(hw_pad: int, c1: int, c2: int) -> int:
    """Largest multiple of 128 dividing hw_pad whose double-buffered streamed
    working set fits the block budget."""
    per_lane = 2 * (c1 + c2 + 2) * 4          # x + out + (amap|zbar), 2 buffers, f32
    cap = max(128, (_BLOCK_VMEM_BUDGET // per_lane) // 128 * 128)
    t = min(hw_pad, cap)
    t -= t % 128
    t = max(t, 128)
    while hw_pad % t != 0:
        t -= 128
    return t


def _vmem_limit_bytes(c1: int, c2: int, tile_s: int) -> int:
    blocks = 2 * (c1 + c2 + 2) * tile_s * 4
    weights = 2 * (c1 * c2 + 4 * c2) * 4      # w1t + scale/shift/wbar, 2 buffers
    need = blocks + weights + (4 << 20)       # slack for Mosaic-internal scratch
    return int(min(max(need, 32 << 20), 56 << 20))


def _lap_matrix(n: int) -> jnp.ndarray:
    """1-D second-difference operator with zero ('same') padding."""
    m = np.zeros((n, n), np.float32)
    i = np.arange(n)
    m[i, i] = -2.0
    m[i[:-1], i[:-1] + 1] = 1.0
    m[i[1:], i[1:] - 1] = 1.0
    return jnp.asarray(m)


# ---------------------------------------------------------------------------
# Stage 1: 1x1 conv -> folded BN -> SiLU -> channel-mean map zbar (via the
#          row-mean of Wrᵀ, linearity) + per-batch spatial sum zsum of z.
# Grid: (batch, spatial tiles).  Big tensors are (C, HW_tile): lane-dense.
# ---------------------------------------------------------------------------
def _stage1_kernel(x_ref, w1t_ref, scale_ref, shift_ref, wbar_ref,
                   zbar_ref, zsum_ref, zacc_ref):
    s = pl.program_id(1)
    n_s = pl.num_programs(1)

    x = x_ref[0]                                                       # (C1, Ts)
    z = jnp.dot(w1t_ref[...], x, preferred_element_type=jnp.float32)   # (C2, Ts)
    z = z * scale_ref[...] + shift_ref[...]                            # folded BN
    z = z * jax.nn.sigmoid(z)                                          # SiLU

    # mean_c(Wrᵀ z) == (row-mean of Wrᵀ) @ z   (depthwise Laplacian commutes
    # with the channel mean, so only this single-channel map gets diffused).
    zbar_ref[0] = jnp.dot(wbar_ref[...], z, preferred_element_type=jnp.float32)

    part = jnp.sum(z, axis=1, keepdims=True)                           # (C2, 1)

    @pl.when(s == 0)
    def _():
        zacc_ref[...] = jnp.zeros_like(zacc_ref)

    zacc_ref[...] = zacc_ref[...] + part

    @pl.when(s == n_s - 1)
    def _():
        zsum_ref[0] = zacc_ref[...]


def _stage1_call(x3, w1t, scale, shift, wbar, tile_s):
    B, C1, HWp = x3.shape
    C2 = w1t.shape[0]
    n_s = HWp // tile_s
    return pl.pallas_call(
        _stage1_kernel,
        out_shape=(jax.ShapeDtypeStruct((B, 1, HWp), jnp.float32),
                   jax.ShapeDtypeStruct((B, C2, 1), jnp.float32)),
        grid=(B, n_s),
        in_specs=[
            pl.BlockSpec((1, C1, tile_s), lambda b, s: (b, 0, s)),
            pl.BlockSpec((C2, C1), lambda b, s: (0, 0)),   # weights fetched once
            pl.BlockSpec((C2, 1), lambda b, s: (0, 0)),
            pl.BlockSpec((C2, 1), lambda b, s: (0, 0)),
            pl.BlockSpec((1, C2), lambda b, s: (0, 0)),
        ],
        out_specs=(
            pl.BlockSpec((1, 1, tile_s), lambda b, s: (b, 0, s)),
            pl.BlockSpec((1, C2, 1), lambda b, s: (b, 0, 0)),   # written at last s
        ),
        scratch_shapes=[pltpu.VMEM((C2, 1), jnp.float32)],
        compiler_params=pltpu.CompilerParams(
            dimension_semantics=("parallel", "arbitrary"),
            vmem_limit_bytes=_vmem_limit_bytes(C1, C2, tile_s)),
    )(x3, w1t, scale, shift, wbar)
    # TODO(synk): for v7x small-batch inference, emit per-tile zsum partials so
    # the spatial axis can also be marked "parallel" (megacore coverage at B=1).


# ---------------------------------------------------------------------------
# Stage 2a: per-batch attention map
#   a = sigmoid(fuse_w * (coef_a * L(zbar) + coef_b * L^2(zbar)))
# Laplacian as T_H @ z + z @ T_W (small MXU matmuls).  Grid: (batch,).
# ---------------------------------------------------------------------------
def _phde_map_kernel(ca_ref, cb_ref, fuse_ref, th_ref, tw_ref, zbar_ref, a_ref):
    b = pl.program_id(0)
    z = zbar_ref[0]                                                  # (H, W)
    th = th_ref[...]
    tw = tw_ref[...]
    l1 = (jnp.dot(th, z, preferred_element_type=jnp.float32)
          + jnp.dot(z, tw, preferred_element_type=jnp.float32))      # L zbar
    l2 = (jnp.dot(th, l1, preferred_element_type=jnp.float32)
          + jnp.dot(l1, tw, preferred_element_type=jnp.float32))     # L^2 zbar
    acc = ca_ref[b] * l1 + cb_ref[b] * l2
    a_ref[0] = jax.nn.sigmoid(fuse_ref[0] * acc)


def _phde_map_call(coef_a, coef_b, fuse_w, th, tw, zbar_hw):
    B, H, W = zbar_hw.shape
    return pl.pallas_call(
        _phde_map_kernel,
        out_shape=jax.ShapeDtypeStruct((B, H, W), jnp.float32),
        grid=(B,),
        in_specs=[
            pl.BlockSpec(memory_space=pltpu.MemorySpace.SMEM),   # coef_a (B,)
            pl.BlockSpec(memory_space=pltpu.MemorySpace.SMEM),   # coef_b (B,)
            pl.BlockSpec(memory_space=pltpu.MemorySpace.SMEM),   # fuse_w (1,)
            pl.BlockSpec((H, H), lambda b: (0, 0)),
            pl.BlockSpec((W, W), lambda b: (0, 0)),
            pl.BlockSpec((1, H, W), lambda b: (b, 0, 0)),
        ],
        out_specs=pl.BlockSpec((1, H, W), lambda b: (b, 0, 0)),
        compiler_params=pltpu.CompilerParams(
            dimension_semantics=("parallel",)),
    )(coef_a, coef_b, fuse_w, th, tw, zbar_hw)


# ---------------------------------------------------------------------------
# Stage 2b: fused recompute + gating.  Re-reads x, recomputes
# z = SiLU(BN(W1ᵀx)) and writes out = z * (1 + a) — the conv intermediate
# never touches HBM.  Grid: (batch, spatial tiles), both parallel.
# ---------------------------------------------------------------------------
def _gate_kernel(x_ref, w1t_ref, scale_ref, shift_ref, a_ref, out_ref):
    x = x_ref[0]                                                       # (C1, Ts)
    z = jnp.dot(w1t_ref[...], x, preferred_element_type=jnp.float32)   # (C2, Ts)
    z = z * scale_ref[...] + shift_ref[...]
    z = z * jax.nn.sigmoid(z)
    out_ref[0] = z * (1.0 + a_ref[0])
    # TODO(synk): cast x / w1t to bf16 (f32 accumulation) if very large channel
    # counts ever make this kernel MXU-bound on v6e/v7x.


def _gate_call(x3, w1t, scale, shift, a_flat, tile_s):
    B, C1, HWp = x3.shape
    C2 = w1t.shape[0]
    n_s = HWp // tile_s
    return pl.pallas_call(
        _gate_kernel,
        out_shape=jax.ShapeDtypeStruct((B, C2, HWp), jnp.float32),
        grid=(B, n_s),
        in_specs=[
            pl.BlockSpec((1, C1, tile_s), lambda b, s: (b, 0, s)),
            pl.BlockSpec((C2, C1), lambda b, s: (0, 0)),
            pl.BlockSpec((C2, 1), lambda b, s: (0, 0)),
            pl.BlockSpec((C2, 1), lambda b, s: (0, 0)),
            pl.BlockSpec((1, 1, tile_s), lambda b, s: (b, 0, s)),
        ],
        out_specs=pl.BlockSpec((1, C2, tile_s), lambda b, s: (b, 0, s)),
        compiler_params=pltpu.CompilerParams(
            dimension_semantics=("parallel", "parallel"),
            vmem_limit_bytes=_vmem_limit_bytes(C1, C2, tile_s)),
    )(x3, w1t, scale, shift, a_flat)


# ---------------------------------------------------------------------------
# Full forward: PHDEConv = Conv(1x1, BN, SiLU) -> PHDE
# ---------------------------------------------------------------------------
@jax.jit
def phde_conv_forward(x, params):
    B, C1, H, W = x.shape
    HW = H * W
    C2 = params["w_conv"].shape[1]

    # NCHW -> (B, C, H*W): pure reshape, HW on the lane axis.  Pad flattened
    # HW to a multiple of 128 so every block is lane-dense and pipelined.
    HW_pad = max(128, ((HW + 127) // 128) * 128)
    n_pad = HW_pad - HW
    x3 = x.reshape(B, C1, HW)
    if n_pad:
        x3 = jnp.pad(x3, ((0, 0), (0, 0), (0, n_pad)))

    tile_s = _pick_tile(HW_pad, C1, C2)

    w1t = params["w_conv"].T                                 # (C2, C1)
    scale = params["bn_scale"].reshape(C2, 1)
    shift = params["bn_shift"].reshape(C2, 1)
    wbar = params["w_reduce"].mean(axis=1).reshape(1, C2)    # row-mean of Wrᵀ

    zbar3, zsum = _stage1_call(x3, w1t, scale, shift, wbar, tile_s)

    # Tiny (B, C2)/(B, CR) glue: GAP -> w_pred MLP -> softmax -> collapse the
    # per-time weights into two per-batch scalars (heat step is linear).
    hp = jax.lax.Precision.HIGHEST
    shift_v = params["bn_shift"]
    pad_z = shift_v * jax.nn.sigmoid(shift_v)        # z value on zero-padded lanes
    zsum_b = zsum[:, :, 0] - float(n_pad) * pad_z[None, :]              # (B, C2)
    y_mean = jnp.dot(zsum_b, params["w_reduce"], precision=hp) / float(HW)
    h1 = jax.nn.relu(jnp.dot(y_mean, params["w_pred1"], precision=hp))
    logits = jnp.dot(h1, params["w_pred2"], precision=hp)               # (B, T)
    wts = jax.nn.softmax(logits, axis=1)[:, :-1]                        # (B, T-1)
    t = params["t_scale"]
    dt = t[1:] - t[:-1]
    dt2 = t[1:] * t[1:] - t[:-1] * t[:-1]
    coef_a = -jnp.sum(wts * dt[None, :], axis=1)        # weight of L(zbar)
    coef_b = 0.5 * jnp.sum(wts * dt2[None, :], axis=1)  # weight of L^2(zbar)

    # Stage 2a: attention map (tiny per-batch single-channel diffusion).
    zbar_hw = zbar3[:, 0, :HW].reshape(B, H, W)
    amap = _phde_map_call(coef_a, coef_b, params["fuse_w"],
                          _lap_matrix(H), _lap_matrix(W), zbar_hw)      # (B,H,W)

    a_flat = amap.reshape(B, 1, HW)
    if n_pad:
        a_flat = jnp.pad(a_flat, ((0, 0), (0, 0), (0, n_pad)))

    # Stage 2b: fused recompute + gate, streamed lane-dense over spatial tiles.
    out3 = _gate_call(x3, w1t, scale, shift, a_flat, tile_s)
    return out3[:, :, :HW].reshape(B, C2, H, W)


# ---------------------------------------------------------------------------
# Deterministic parameters (matching the PyTorch module shapes; BN folded for
# inference mode).
# ---------------------------------------------------------------------------
def init_params(key, c1, c2, phde_r=4, num_times=3):
    cr = max(8, c2 // phde_r)
    hid = max(8, cr // 2)
    ks = jax.random.split(key, 8)

    w_conv = 0.3 * jax.random.normal(ks[0], (c1, c2), jnp.float32)     # Conv2d(c1,c2,1)
    gamma = 1.0 + 0.1 * jax.random.normal(ks[1], (c2,), jnp.float32)
    beta = 0.1 * jax.random.normal(ks[2], (c2,), jnp.float32)
    run_mean = 0.05 * jax.random.normal(ks[3], (c2,), jnp.float32)
    run_var = 0.5 + jax.random.uniform(ks[4], (c2,), jnp.float32)
    eps = 1e-5
    bn_scale = gamma / jnp.sqrt(run_var + eps)
    bn_shift = beta - run_mean * bn_scale

    w_reduce = 0.3 * jax.random.normal(ks[5], (c2, cr), jnp.float32)   # Conv2d(c2,cr,1)
    w_pred1 = 0.3 * jax.random.normal(ks[6], (cr, hid), jnp.float32)   # Conv2d(cr,hid,1)
    w_pred2 = 0.3 * jax.random.normal(ks[7], (hid, num_times), jnp.float32)

    return {
        "w_conv": w_conv,
        "bn_scale": bn_scale,
        "bn_shift": bn_shift,
        "w_reduce": w_reduce,
        "w_pred1": w_pred1,
        "w_pred2": w_pred2,
        "t_scale": jnp.array([0.5, 1.0, 2.0], jnp.float32),
        "fuse_w": jnp.array([0.7], jnp.float32),       # Conv2d(1,1,1,bias=False)
    }


# ---------------------------------------------------------------------------
# Pure-JAX transliteration of PHDEConv.forward (numerics check only).
# ---------------------------------------------------------------------------
def _reference_forward(x, params):
    hp = jax.lax.Precision.HIGHEST
    z = jnp.einsum("bchw,cd->bdhw", x, params["w_conv"], precision=hp)
    z = (z * params["bn_scale"].reshape(1, -1, 1, 1)
         + params["bn_shift"].reshape(1, -1, 1, 1))
    z = z * jax.nn.sigmoid(z)                                      # Conv+BN+SiLU
    y = jnp.einsum("bchw,cd->bdhw", z, params["w_reduce"], precision=hp)

    def lap(u):  # depthwise 3x3 [[0,1,0],[1,-4,1],[0,1,0]], zero 'same' padding
        p = jnp.pad(u, ((0, 0), (0, 0), (1, 1), (1, 1)))
        return (p[:, :, :-2, 1:-1] + p[:, :, 2:, 1:-1]
                + p[:, :, 1:-1, :-2] + p[:, :, 1:-1, 2:] - 4.0 * u)

    y1 = lap(y)
    y2 = lap(y1)
    t = params["t_scale"]
    feats = [y - t[i] * y1 + 0.5 * t[i] * t[i] * y2 for i in range(t.shape[0])]
    Hs = jnp.stack(feats, axis=1)                                  # (B,T,CR,H,W)
    P = (Hs[:, 1:] - Hs[:, :-1]).mean(axis=2)                      # (B,T-1,H,W)
    w_ctx = y.mean(axis=(2, 3))                                    # (B, CR)
    h1 = jax.nn.relu(jnp.dot(w_ctx, params["w_pred1"], precision=hp))
    logits = jnp.dot(h1, params["w_pred2"], precision=hp)
    wts = jax.nn.softmax(logits, axis=1)[:, :-1]                   # (B, T-1)
    wp = jnp.einsum("bthw,bt->bhw", P, wts, precision=hp)[:, None]
    a = jax.nn.sigmoid(params["fuse_w"][0] * wp)
    return z * (1.0 + a)


if __name__ == "__main__":
    B, C1, C2, H, W = 2, 4, 8, 16, 16
    key = jax.random.PRNGKey(0)
    k_x, k_p = jax.random.split(key)
    x = jax.random.normal(k_x, (B, C1, H, W), jnp.float32)
    params = init_params(k_p, C1, C2)

    out = phde_conv_forward(x, params)
    jax.block_until_ready(out)
    assert out.shape == (B, C2, H, W), out.shape
    assert out.dtype == jnp.float32

    ref = _reference_forward(x, params)
    max_err = float(jnp.max(jnp.abs(out - ref)))
    assert max_err < 1e-2, max_err
    print("KERNEL_OK")
</pallas_src>

<mosaic_0001>
module attributes {stable_mosaic.version = 11 : i64} {
  func.func @_stage1_kernel(%arg0: i32, %arg1: i32, %arg2: memref<1x4x256xf32, #tpu.memory_space<vmem>>, %arg3: memref<8x4xf32, #tpu.memory_space<vmem>>, %arg4: memref<8x1xf32, #tpu.memory_space<vmem>>, %arg5: memref<8x1xf32, #tpu.memory_space<vmem>>, %arg6: memref<1x8xf32, #tpu.memory_space<vmem>>, %arg7: memref<1x1x256xf32, #tpu.memory_space<vmem>>, %arg8: memref<1x8x1xf32, #tpu.memory_space<vmem>>, %arg9: memref<8x1xf32, #tpu.memory_space<vmem>>) attributes {dimension_semantics = [#tpu.dimension_semantics<parallel>, #tpu.dimension_semantics<arbitrary>], iteration_bounds = array<i64: 2, 1>, scalar_prefetch = 0 : i64, scratch_operands = 1 : i64, tpu.core_type = #tpu.core_type<tc>, window_params = [{transform_indices = @transform_0, window_bounds = array<i64: 1, 4, 256>}, {pipeline_mode = #tpu.pipeline_mode<synchronous>, transform_indices = @transform_1, window_bounds = array<i64: 8, 4>}, {pipeline_mode = #tpu.pipeline_mode<synchronous>, transform_indices = @transform_2, window_bounds = array<i64: 8, 1>}, {pipeline_mode = #tpu.pipeline_mode<synchronous>, transform_indices = @transform_3, window_bounds = array<i64: 8, 1>}, {pipeline_mode = #tpu.pipeline_mode<synchronous>, transform_indices = @transform_4, window_bounds = array<i64: 1, 8>}, {transform_indices = @transform_5, window_bounds = array<i64: 1, 1, 256>}, {transform_indices = @transform_6, window_bounds = array<i64: 1, 8, 1>}]} {
    %c0 = arith.constant 0 : index
    %c0_0 = arith.constant 0 : index
    %c0_1 = arith.constant 0 : index
    %0 = vector.load %arg2[%c0, %c0_0, %c0_1] : memref<1x4x256xf32, #tpu.memory_space<vmem>>, vector<1x4x256xf32>
    %1 = vector.shape_cast %0 : vector<1x4x256xf32> to vector<4x256xf32>
    %c0_2 = arith.constant 0 : index
    %c0_3 = arith.constant 0 : index
    %2 = vector.load %arg3[%c0_2, %c0_3] : memref<8x4xf32, #tpu.memory_space<vmem>>, vector<8x4xf32>
    %cst = arith.constant dense<0.000000e+00> : vector<8x256xf32>
    %3 = tpu.matmul %2, %1, %cst {dimension_numbers = #tpu.dot_dimension_numbers<[1], [0], [0], [1], [0, 0, 1, 1], [], []>} : vector<8x4xf32>, vector<4x256xf32>, vector<8x256xf32> -> vector<8x256xf32>
    %c0_4 = arith.constant 0 : index
    %c0_5 = arith.constant 0 : index
    %4 = vector.load %arg4[%c0_4, %c0_5] : memref<8x1xf32, #tpu.memory_space<vmem>>, vector<8x1xf32>
    %5 = vector.broadcast %4 : vector<8x1xf32> to vector<8x256xf32>
    %6 = arith.mulf %3, %5 : vector<8x256xf32>
    %c0_6 = arith.constant 0 : index
    %c0_7 = arith.constant 0 : index
    %7 = vector.load %arg5[%c0_6, %c0_7] : memref<8x1xf32, #tpu.memory_space<vmem>>, vector<8x1xf32>
    %8 = vector.broadcast %7 : vector<8x1xf32> to vector<8x256xf32>
    %9 = arith.addf %6, %8 : vector<8x256xf32>
    %10 = arith.negf %9 : vector<8x256xf32>
    %11 = math.exp %10 : vector<8x256xf32>
    %cst_8 = arith.constant 1.000000e+00 : f32
    %12 = vector.broadcast %cst_8 : f32 to vector<8x256xf32>
    %13 = arith.addf %12, %11 : vector<8x256xf32>
    %14 = arith.divf %12, %13 : vector<8x256xf32>
    %15 = arith.mulf %9, %14 : vector<8x256xf32>
    %c0_9 = arith.constant 0 : index
    %c0_10 = arith.constant 0 : index
    %16 = vector.load %arg6[%c0_9, %c0_10] : memref<1x8xf32, #tpu.memory_space<vmem>>, vector<1x8xf32>
    %cst_11 = arith.constant dense<0.000000e+00> : vector<1x256xf32>
    %17 = tpu.matmul %16, %15, %cst_11 {dimension_numbers = #tpu.dot_dimension_numbers<[1], [0], [0], [1], [0, 0, 1, 1], [], []>} : vector<1x8xf32>, vector<8x256xf32>, vector<1x256xf32> -> vector<1x256xf32>
    %c0_12 = arith.constant 0 : index
    %c0_13 = arith.constant 0 : index
    %c0_14 = arith.constant 0 : index
    %18 = vector.load %arg7[%c0_12, %c0_13, %c0_14] : memref<1x1x256xf32, #tpu.memory_space<vmem>>, vector<1x1x256xf32>
    %19 = vector.shape_cast %18 : vector<1x1x256xf32> to vector<1x256xf32>
    %20 = vector.shape_cast %17 : vector<1x256xf32> to vector<1x1x256xf32>
    tpu.vector_store %arg7[%c0_12, %c0_13, %c0_14], %20 {strides = array<i32>} : memref<1x1x256xf32, #tpu.memory_space<vmem>>, vector<1x1x256xf32>,
    %cst_15 = arith.constant dense<0.000000e+00> : vector<8xf32>
    %21 = vector.multi_reduction <add>, %15, %cst_15 [1] : vector<8x256xf32> to vector<8xf32>
    %22 = vector.shape_cast %21 : vector<8xf32> to vector<8x1xf32>
    %c0_i32 = arith.constant 0 : i32
    %23 = arith.cmpi eq, %arg1, %c0_i32 : i32
    %24 = arith.extui %23 : i1 to i32
    %c0_i32_16 = arith.constant 0 : i32
    %25 = arith.cmpi ne, %24, %c0_i32_16 : i32
    scf.if %25 {
      %cst_23 = arith.constant 0.000000e+00 : f32
      %32 = vector.broadcast %cst_23 : f32 to vector<8x1xf32>
      %c0_24 = arith.constant 0 : index
      %c0_25 = arith.constant 0 : index
      %33 = vector.load %arg9[%c0_24, %c0_25] : memref<8x1xf32, #tpu.memory_space<vmem>>, vector<8x1xf32>
      tpu.vector_store %arg9[%c0_24, %c0_25], %32 {strides = array<i32>} : memref<8x1xf32, #tpu.memory_space<vmem>>, vector<8x1xf32>,
    } else {
    }
    %c0_17 = arith.constant 0 : index
    %c0_18 = arith.constant 0 : index
    %26 = vector.load %arg9[%c0_17, %c0_18] : memref<8x1xf32, #tpu.memory_space<vmem>>, vector<8x1xf32>
    %27 = arith.addf %26, %22 : vector<8x1xf32>
    %c0_19 = arith.constant 0 : index
    %c0_20 = arith.constant 0 : index
    %28 = vector.load %arg9[%c0_19, %c0_20] : memref<8x1xf32, #tpu.memory_space<vmem>>, vector<8x1xf32>
    tpu.vector_store %arg9[%c0_19, %c0_20], %27 {strides = array<i32>} : memref<8x1xf32, #tpu.memory_space<vmem>>, vector<8x1xf32>,
    %c0_i32_21 = arith.constant 0 : i32
    %29 = arith.cmpi eq, %arg1, %c0_i32_21 : i32
    %30 = arith.extui %29 : i1 to i32
    %c0_i32_22 = arith.constant 0 : i32
    %31 = arith.cmpi ne, %30, %c0_i32_22 : i32
    scf.if %31 {
      %c0_23 = arith.constant 0 : index
      %c0_24 = arith.constant 0 : index
      %32 = vector.load %arg9[%c0_23, %c0_24] : memref<8x1xf32, #tpu.memory_space<vmem>>, vector<8x1xf32>
      %c0_25 = arith.constant 0 : index
      %c0_26 = arith.constant 0 : index
      %c0_27 = arith.constant 0 : index
      %33 = vector.load %arg8[%c0_25, %c0_26, %c0_27] : memref<1x8x1xf32, #tpu.memory_space<vmem>>, vector<1x8x1xf32>
      %34 = vector.shape_cast %33 : vector<1x8x1xf32> to vector<8x1xf32>
      %35 = vector.shape_cast %32 : vector<8x1xf32> to vector<1x8x1xf32>
      tpu.vector_store %arg8[%c0_25, %c0_26, %c0_27], %35 {strides = array<i32>} : memref<1x8x1xf32, #tpu.memory_space<vmem>>, vector<1x8x1xf32>,
    } else {
    }
    return
  }
  func.func @transform_0(%arg0: i32, %arg1: i32) -> (i32, i32, i32) {
    %c0_i32 = arith.constant 0 : i32
    %c0_i32_0 = arith.constant 0 : i32
    return %arg0, %c0_i32, %arg1 : i32, i32, i32
  }
  func.func @transform_1(%arg0: i32, %arg1: i32) -> (i32, i32) {
    %c0_i32 = arith.constant 0 : i32
    %c0_i32_0 = arith.constant 0 : i32
    %c0_i32_1 = arith.constant 0 : i32
    return %c0_i32, %c0_i32_0 : i32, i32
  }
  func.func @transform_2(%arg0: i32, %arg1: i32) -> (i32, i32) {
    %c0_i32 = arith.constant 0 : i32
    %c0_i32_0 = arith.constant 0 : i32
    %c0_i32_1 = arith.constant 0 : i32
    return %c0_i32, %c0_i32_0 : i32, i32
  }
  func.func @transform_3(%arg0: i32, %arg1: i32) -> (i32, i32) {
    %c0_i32 = arith.constant 0 : i32
    %c0_i32_0 = arith.constant 0 : i32
    %c0_i32_1 = arith.constant 0 : i32
    return %c0_i32, %c0_i32_0 : i32, i32
  }
  func.func @transform_4(%arg0: i32, %arg1: i32) -> (i32, i32) {
    %c0_i32 = arith.constant 0 : i32
    %c0_i32_0 = arith.constant 0 : i32
    %c0_i32_1 = arith.constant 0 : i32
    return %c0_i32, %c0_i32_0 : i32, i32
  }
  func.func @transform_5(%arg0: i32, %arg1: i32) -> (i32, i32, i32) {
    %c0_i32 = arith.constant 0 : i32
    %c0_i32_0 = arith.constant 0 : i32
    return %arg0, %c0_i32, %arg1 : i32, i32, i32
  }
  func.func @transform_6(%arg0: i32, %arg1: i32) -> (i32, i32, i32) {
    %c0_i32 = arith.constant 0 : i32
    %c0_i32_0 = arith.constant 0 : i32
    %c0_i32_1 = arith.constant 0 : i32
    return %arg0, %c0_i32, %c0_i32_0 : i32, i32, i32
  }
}

module attributes {stable_mosaic.version = 11 : i64} {
  func.func @_phde_map_kernel(%arg0: i32, %arg1: memref<2xf32, #tpu.memory_space<smem>>, %arg2: memref<2xf32, #tpu.memory_space<smem>>, %arg3: memref<1xf32, #tpu.memory_space<smem>>, %arg4: memref<16x16xf32, #tpu.memory_space<vmem>>, %arg5: memref<16x16xf32, #tpu.memory_space<vmem>>, %arg6: memref<1x16x16xf32, #tpu.memory_space<vmem>>, %arg7: memref<1x16x16xf32, #tpu.memory_space<vmem>>) attributes {dimension_semantics = [#tpu.dimension_semantics<parallel>], iteration_bounds = array<i64: 2>, scalar_prefetch = 0 : i64, scratch_operands = 0 : i64, tpu.core_type = #tpu.core_type<tc>, window_params = [{transform_indices = @transform_0, window_bounds = array<i64: 2>}, {transform_indices = @transform_1, window_bounds = array<i64: 2>}, {transform_indices = @transform_2, window_bounds = array<i64: 1>}, {pipeline_mode = #tpu.pipeline_mode<synchronous>, transform_indices = @transform_3, window_bounds = array<i64: 16, 16>}, {pipeline_mode = #tpu.pipeline_mode<synchronous>, transform_indices = @transform_4, window_bounds = array<i64: 16, 16>}, {transform_indices = @transform_5, window_bounds = array<i64: 1, 16, 16>}, {transform_indices = @transform_6, window_bounds = array<i64: 1, 16, 16>}]} {
    %c0 = arith.constant 0 : index
    %c0_0 = arith.constant 0 : index
    %c0_1 = arith.constant 0 : index
    %0 = vector.load %arg6[%c0, %c0_0, %c0_1] : memref<1x16x16xf32, #tpu.memory_space<vmem>>, vector<1x16x16xf32>
    %1 = vector.shape_cast %0 : vector<1x16x16xf32> to vector<16x16xf32>
    %c0_2 = arith.constant 0 : index
    %c0_3 = arith.constant 0 : index
    %2 = vector.load %arg4[%c0_2, %c0_3] : memref<16x16xf32, #tpu.memory_space<vmem>>, vector<16x16xf32>
    %c0_4 = arith.constant 0 : index
    %c0_5 = arith.constant 0 : index
    %3 = vector.load %arg5[%c0_4, %c0_5] : memref<16x16xf32, #tpu.memory_space<vmem>>, vector<16x16xf32>
    %cst = arith.constant dense<0.000000e+00> : vector<16x16xf32>
    %4 = tpu.matmul %2, %1, %cst {dimension_numbers = #tpu.dot_dimension_numbers<[1], [0], [0], [1], [0, 0, 1, 1], [], []>} : vector<16x16xf32>, vector<16x16xf32>, vector<16x16xf32> -> vector<16x16xf32>
    %cst_6 = arith.constant dense<0.000000e+00> : vector<16x16xf32>
    %5 = tpu.matmul %1, %3, %cst_6 {dimension_numbers = #tpu.dot_dimension_numbers<[1], [0], [0], [1], [0, 0, 1, 1], [], []>} : vector<16x16xf32>, vector<16x16xf32>, vector<16x16xf32> -> vector<16x16xf32>
    %6 = arith.addf %4, %5 : vector<16x16xf32>
    %cst_7 = arith.constant dense<0.000000e+00> : vector<16x16xf32>
    %7 = tpu.matmul %2, %6, %cst_7 {dimension_numbers = #tpu.dot_dimension_numbers<[1], [0], [0], [1], [0, 0, 1, 1], [], []>} : vector<16x16xf32>, vector<16x16xf32>, vector<16x16xf32> -> vector<16x16xf32>
    %cst_8 = arith.constant dense<0.000000e+00> : vector<16x16xf32>
    %8 = tpu.matmul %6, %3, %cst_8 {dimension_numbers = #tpu.dot_dimension_numbers<[1], [0], [0], [1], [0, 0, 1, 1], [], []>} : vector<16x16xf32>, vector<16x16xf32>, vector<16x16xf32> -> vector<16x16xf32>
    %9 = arith.addf %7, %8 : vector<16x16xf32>
    %10 = arith.index_cast %arg0 : i32 to index
    %11 = memref.load %arg1[%10] : memref<2xf32, #tpu.memory_space<smem>>
    %12 = vector.broadcast %11 : f32 to vector<16x16xf32>
    %13 = arith.mulf %12, %6 : vector<16x16xf32>
    %14 = arith.index_cast %arg0 : i32 to index
    %15 = memref.load %arg2[%14] : memref<2xf32, #tpu.memory_space<smem>>
    %16 = vector.broadcast %15 : f32 to vector<16x16xf32>
    %17 = arith.mulf %16, %9 : vector<16x16xf32>
    %18 = arith.addf %13, %17 : vector<16x16xf32>
    %c0_9 = arith.constant 0 : index
    %19 = memref.load %arg3[%c0_9] : memref<1xf32, #tpu.memory_space<smem>>
    %20 = vector.broadcast %19 : f32 to vector<16x16xf32>
    %21 = arith.mulf %20, %18 : vector<16x16xf32>
    %22 = arith.negf %21 : vector<16x16xf32>
    %23 = math.exp %22 : vector<16x16xf32>
    %cst_10 = arith.constant 1.000000e+00 : f32
    %24 = vector.broadcast %cst_10 : f32 to vector<16x16xf32>
    %25 = arith.addf %24, %23 : vector<16x16xf32>
    %26 = arith.divf %24, %25 : vector<16x16xf32>
    %c0_11 = arith.constant 0 : index
    %c0_12 = arith.constant 0 : index
    %c0_13 = arith.constant 0 : index
    %27 = vector.load %arg7[%c0_11, %c0_12, %c0_13] : memref<1x16x16xf32, #tpu.memory_space<vmem>>, vector<1x16x16xf32>
    %28 = vector.shape_cast %27 : vector<1x16x16xf32> to vector<16x16xf32>
    %29 = vector.shape_cast %26 : vector<16x16xf32> to vector<1x16x16xf32>
    tpu.vector_store %arg7[%c0_11, %c0_12, %c0_13], %29 {strides = array<i32>} : memref<1x16x16xf32, #tpu.memory_space<vmem>>, vector<1x16x16xf32>,
    return
  }
  func.func @transform_0(%arg0: i32) -> i32 {
    %c0_i32 = arith.constant 0 : i32
    %c0_i32_0 = arith.constant 0 : i32
    return %c0_i32 : i32
  }
  func.func @transform_1(%arg0: i32) -> i32 {
    %c0_i32 = arith.constant 0 : i32
    %c0_i32_0 = arith.constant 0 : i32
    return %c0_i32 : i32
  }
  func.func @transform_2(%arg0: i32) -> i32 {
    %c0_i32 = arith.constant 0 : i32
    %c0_i32_0 = arith.constant 0 : i32
    return %c0_i32 : i32
  }
  func.func @transform_3(%arg0: i32) -> (i32, i32) {
    %c0_i32 = arith.constant 0 : i32
    %c0_i32_0 = arith.constant 0 : i32
    %c0_i32_1 = arith.constant 0 : i32
    return %c0_i32, %c0_i32_0 : i32, i32
  }
  func.func @transform_4(%arg0: i32) -> (i32, i32) {
    %c0_i32 = arith.constant 0 : i32
    %c0_i32_0 = arith.constant 0 : i32
    %c0_i32_1 = arith.constant 0 : i32
    return %c0_i32, %c0_i32_0 : i32, i32
  }
  func.func @transform_5(%arg0: i32) -> (i32, i32, i32) {
    %c0_i32 = arith.constant 0 : i32
    %c0_i32_0 = arith.constant 0 : i32
    %c0_i32_1 = arith.constant 0 : i32
    return %arg0, %c0_i32, %c0_i32_0 : i32, i32, i32
  }
  func.func @transform_6(%arg0: i32) -> (i32, i32, i32) {
    %c0_i32 = arith.constant 0 : i32
    %c0_i32_0 = arith.constant 0 : i32
    %c0_i32_1 = arith.constant 0 : i32
    return %arg0, %c0_i32, %c0_i32_0 : i32, i32, i32
  }
}

module attributes {stable_mosaic.version = 11 : i64} {
  func.func @_gate_kernel(%arg0: i32, %arg1: i32, %arg2: memref<1x4x256xf32, #tpu.memory_space<vmem>>, %arg3: memref<8x4xf32, #tpu.memory_space<vmem>>, %arg4: memref<8x1xf32, #tpu.memory_space<vmem>>, %arg5: memref<8x1xf32, #tpu.memory_space<vmem>>, %arg6: memref<1x1x256xf32, #tpu.memory_space<vmem>>, %arg7: memref<1x8x256xf32, #tpu.memory_space<vmem>>) attributes {dimension_semantics = [#tpu.dimension_semantics<parallel>, #tpu.dimension_semantics<parallel>], iteration_bounds = array<i64: 2, 1>, scalar_prefetch = 0 : i64, scratch_operands = 0 : i64, tpu.core_type = #tpu.core_type<tc>, window_params = [{transform_indices = @transform_0, window_bounds = array<i64: 1, 4, 256>}, {pipeline_mode = #tpu.pipeline_mode<synchronous>, transform_indices = @transform_1, window_bounds = array<i64: 8, 4>}, {pipeline_mode = #tpu.pipeline_mode<synchronous>, transform_indices = @transform_2, window_bounds = array<i64: 8, 1>}, {pipeline_mode = #tpu.pipeline_mode<synchronous>, transform_indices = @transform_3, window_bounds = array<i64: 8, 1>}, {transform_indices = @transform_4, window_bounds = array<i64: 1, 1, 256>}, {transform_indices = @transform_5, window_bounds = array<i64: 1, 8, 256>}]} {
    %c0 = arith.constant 0 : index
    %c0_0 = arith.constant 0 : index
    %c0_1 = arith.constant 0 : index
    %0 = vector.load %arg2[%c0, %c0_0, %c0_1] : memref<1x4x256xf32, #tpu.memory_space<vmem>>, vector<1x4x256xf32>
    %1 = vector.shape_cast %0 : vector<1x4x256xf32> to vector<4x256xf32>
    %c0_2 = arith.constant 0 : index
    %c0_3 = arith.constant 0 : index
    %2 = vector.load %arg3[%c0_2, %c0_3] : memref<8x4xf32, #tpu.memory_space<vmem>>, vector<8x4xf32>
    %cst = arith.constant dense<0.000000e+00> : vector<8x256xf32>
    %3 = tpu.matmul %2, %1, %cst {dimension_numbers = #tpu.dot_dimension_numbers<[1], [0], [0], [1], [0, 0, 1, 1], [], []>} : vector<8x4xf32>, vector<4x256xf32>, vector<8x256xf32> -> vector<8x256xf32>
    %c0_4 = arith.constant 0 : index
    %c0_5 = arith.constant 0 : index
    %4 = vector.load %arg4[%c0_4, %c0_5] : memref<8x1xf32, #tpu.memory_space<vmem>>, vector<8x1xf32>
    %5 = vector.broadcast %4 : vector<8x1xf32> to vector<8x256xf32>
    %6 = arith.mulf %3, %5 : vector<8x256xf32>
    %c0_6 = arith.constant 0 : index
    %c0_7 = arith.constant 0 : index
    %7 = vector.load %arg5[%c0_6, %c0_7] : memref<8x1xf32, #tpu.memory_space<vmem>>, vector<8x1xf32>
    %8 = vector.broadcast %7 : vector<8x1xf32> to vector<8x256xf32>
    %9 = arith.addf %6, %8 : vector<8x256xf32>
    %10 = arith.negf %9 : vector<8x256xf32>
    %11 = math.exp %10 : vector<8x256xf32>
    %cst_8 = arith.constant 1.000000e+00 : f32
    %12 = vector.broadcast %cst_8 : f32 to vector<8x256xf32>
    %13 = arith.addf %12, %11 : vector<8x256xf32>
    %14 = arith.divf %12, %13 : vector<8x256xf32>
    %15 = arith.mulf %9, %14 : vector<8x256xf32>
    %c0_9 = arith.constant 0 : index
    %c0_10 = arith.constant 0 : index
    %c0_11 = arith.constant 0 : index
    %16 = vector.load %arg6[%c0_9, %c0_10, %c0_11] : memref<1x1x256xf32, #tpu.memory_space<vmem>>, vector<1x1x256xf32>
    %17 = vector.shape_cast %16 : vector<1x1x256xf32> to vector<1x256xf32>
    %cst_12 = arith.constant 1.000000e+00 : f32
    %18 = vector.broadcast %cst_12 : f32 to vector<1x256xf32>
    %19 = arith.addf %18, %17 : vector<1x256xf32>
    %20 = vector.broadcast %19 : vector<1x256xf32> to vector<8x256xf32>
    %21 = arith.mulf %15, %20 : vector<8x256xf32>
    %c0_13 = arith.constant 0 : index
    %c0_14 = arith.constant 0 : index
    %c0_15 = arith.constant 0 : index
    %22 = vector.load %arg7[%c0_13, %c0_14, %c0_15] : memref<1x8x256xf32, #tpu.memory_space<vmem>>, vector<1x8x256xf32>
    %23 = vector.shape_cast %22 : vector<1x8x256xf32> to vector<8x256xf32>
    %24 = vector.shape_cast %21 : vector<8x256xf32> to vector<1x8x256xf32>
    tpu.vector_store %arg7[%c0_13, %c0_14, %c0_15], %24 {strides = array<i32>} : memref<1x8x256xf32, #tpu.memory_space<vmem>>, vector<1x8x256xf32>,
    return
  }
  func.func @transform_0(%arg0: i32, %arg1: i32) -> (i32, i32, i32) {
    %c0_i32 = arith.constant 0 : i32
    %c0_i32_0 = arith.constant 0 : i32
    return %arg0, %c0_i32, %arg1 : i32, i32, i32
  }
  func.func @transform_1(%arg0: i32, %arg1: i32) -> (i32, i32) {
    %c0_i32 = arith.constant 0 : i32
    %c0_i32_0 = arith.constant 0 : i32
    %c0_i32_1 = arith.constant 0 : i32
    return %c0_i32, %c0_i32_0 : i32, i32
  }
  func.func @transform_2(%arg0: i32, %arg1: i32) -> (i32, i32) {
    %c0_i32 = arith.constant 0 : i32
    %c0_i32_0 = arith.constant 0 : i32
    %c0_i32_1 = arith.constant 0 : i32
    return %c0_i32, %c0_i32_0 : i32, i32
  }
  func.func @transform_3(%arg0: i32, %arg1: i32) -> (i32, i32) {
    %c0_i32 = arith.constant 0 : i32
    %c0_i32_0 = arith.constant 0 : i32
    %c0_i32_1 = arith.constant 0 : i32
    return %c0_i32, %c0_i32_0 : i32, i32
  }
  func.func @transform_4(%arg0: i32, %arg1: i32) -> (i32, i32, i32) {
    %c0_i32 = arith.constant 0 : i32
    %c0_i32_0 = arith.constant 0 : i32
    return %arg0, %c0_i32, %arg1 : i32, i32, i32
  }
  func.func @transform_5(%arg0: i32, %arg1: i32) -> (i32, i32, i32) {
    %c0_i32 = arith.constant 0 : i32
    %c0_i32_0 = arith.constant 0 : i32
    return %arg0, %c0_i32, %arg1 : i32, i32, i32
  }
}

</mosaic_0001>

<llo_original>
// kernel: neg.3
$region0: #{neg.3}
  #allocation0 [shape = 's32[1]{0}', space=sflag, size = 0x4, scoped, tag = 'scoped memory for neg.3']
  %s0 = inlined_call_operand.vmem [shape: f32[2], index: 0, kind: input, shape index: {}]
  %s1 = inlined_call_operand.vmem [shape: f32[2], index: 1, kind: output, shape index: {}]
  %v2 = vld [vmem:[%s0] sm:$0x1]
  %3 = xla_tuple %v2
  %4 = xla_tuple %3
  %v5 = vxor.u32 %v2, 2147483648
  %6 = xla_tuple %v5
  %7 = vst [vmem:[%s1] sm:$0x1] %v5

// kernel: squeeze.3
$region0: #{squeeze.3}
  %s0 = inlined_call_operand.vmem [shape: f32[2,256], index: 0, kind: input, shape index: {}]
  %s1 = inlined_call_operand.vmem [shape: f32[2,16,16], index: 1, kind: output, shape index: {}]
  $region1: #{squeeze.3} parent=0
    #allocation0 [shape = 'u8[8192]{0}', space=vmem, size = 0x2000, scoped, tag = 'scoped mem for input reshape']
    %s3 = ssub.s32 4, 1
    %s4 = scalar_lea.vmem %s0, 2
    %v5 = vld [vmem:[%s4] sm:%s3]
    %s6 = scalar_lea.vmem [#allocation0], 8
    %7 = vst [vmem:[%s6] sm:%s3] %v5
    %v8 = vld [vmem:[%s0] sm:%s3]
    %9 = vst [vmem:[#allocation0] sm:%s3] %v8
    %v10 = vld [vmem:[#allocation0] sm:$0x3]
    %vm11 = vcmask 130048
    %12 = vst.msk [vmem:[%s1] ss:$16 sm:$0x3] %vm11, %v10
    %s13 = scalar_lea.vmem [#allocation0], 8
    %v14 = vld [vmem:[%s13] sm:$0x3]
    %vm15 = vcmask 130048
    %s16 = scalar_lea.vmem %s1, 8
    %17 = vst.msk [vmem:[%s16] ss:$16 sm:$0x3] %vm15, %v14
    %v18 = vld.sshfl [vmem:[#allocation0] sm:$0xff pattern:$0x99999180]
    %19 = vrot.lane.b32.xlu0 %v18, 112
    %v20 = vpop.permute.xlu0 %19
    %vm21 = vcmask 130048
    %s22 = scalar_lea.vmem %s1, 1
    %23 = vst.msk [vmem:[%s22] ss:$8 sm:$0xf] %vm21, %v20
    %v24 = vld.sshfl [vmem:[#allocation0] sm:$0xff pattern:$0x99999180]
    %25 = vrot.lane.b32.xlu0 %v24, 96
    %v26 = vpop.permute.xlu0 %25
    %vm27 = vcmask 130048
    %s28 = scalar_lea.vmem %s1, 2
    %29 = vst.msk [vmem:[%s28] ss:$8 sm:$0xf] %vm27, %v26
    %v30 = vld.sshfl [vmem:[#allocation0] sm:$0xff pattern:$0x99999180]
    %31 = vrot.lane.b32.xlu0 %v30, 80
    %v32 = vpop.permute.xlu0 %31
    %vm33 = vcmask 130048
    %s34 = scalar_lea.vmem %s1, 3
    %35 = vst.msk [vmem:[%s34] ss:$8 sm:$0xf] %vm33, %v32
    %v36 = vld.sshfl [vmem:[#allocation0] sm:$0xff pattern:$0x99999180]
    %37 = vrot.lane.b32.xlu0 %v36, 64
    %v38 = vpop.permute.xlu0 %37
    %vm39 = vcmask 130048
    %s40 = scalar_lea.vmem %s1, 4
    %41 = vst.msk [vmem:[%s40] ss:$8 sm:$0xf] %vm39, %v38
    %v42 = vld.sshfl [vmem:[#allocation0] sm:$0xff pattern:$0x99999180]
    %43 = vrot.lane.b32.xlu0 %v42, 48
    %v44 = vpop.permute.xlu0 %43
    %vm45 = vcmask 130048
    %s46 = scalar_lea.vmem %s1, 5
    %47 = vst.msk [vmem:[%s46] ss:$8 sm:$0xf] %vm45, %v44
    %v48 = vld.sshfl [vmem:[#allocation0] sm:$0xff pattern:$0x99999180]
    %49 = vrot.lane.b32.xlu0 %v48, 32
    %v50 = vpop.permute.xlu0 %49
    %vm51 = vcmask 130048
    %s52 = scalar_lea.vmem %s1, 6
    %53 = vst.msk [vmem:[%s52] ss:$8 sm:$0xf] %vm51, %v50
    %v54 = vld.sshfl [vmem:[#allocation0] sm:$0xff pattern:$0x99999180]
    %55 = vrot.lane.b32.xlu0 %v54, 16
    %v56 = vpop.permute.xlu0 %55
    %vm57 = vcmask 130048
    %s58 = scalar_lea.vmem %s1, 7
    %59 = vst.msk [vmem:[%s58] ss:$8 sm:$0xf] %vm57, %v56

// kernel: phde_conv_forward.3
$region0: #{phde_conv_forward.3}
  #allocation0 [shape = 'u32[]', space=smem, size = 0x4, offset = 0x4, fixed_abs, tag = 'smem constant byte address 0x4 - core index']
  #allocation1 [shape = 'u32[72,128]{1,0:T(1,128)}', space=vmem, size = 0x9000, scoped, tag = 'internal scratch']
  #allocation2 [shape = 'f32[8,1]{1,0:T(8,128)}', space=vmem, size = 0x1000, scoped, tag = 'scratch operand']
  %s0 = inlined_call_operand.vmem [shape: f32[2,4,256], index: 0, kind: input, shape index: {}]
  %s1 = inlined_call_operand.vmem [shape: f32[8,4], index: 1, kind: input, shape index: {}]
  %s2 = inlined_call_operand.vmem [shape: f32[8,1], index: 2, kind: input, shape index: {}]
  %s3 = inlined_call_operand.vmem [shape: f32[8,1], index: 3, kind: input, shape index: {}]
  %s4 = inlined_call_operand.vmem [shape: f32[1,8], index: 4, kind: input, shape index: {}]
  %s5 = inlined_call_operand.vmem [shape: f32[2,1,256], index: 5, kind: output, shape index: {0}]
  %s6 = inlined_call_operand.vmem [shape: f32[2,8,1], index: 6, kind: output, shape index: {1}]
  %7 = xla_tuple %s5, %s6
  %s8 = sld [smem:[#allocation0]]
  $region69: #{phde_conv_forward.3} parent=0
    _
  %s10 = ssub.s32 1, %s8
  %s11 = scalar_select 0, %s10, %s8
  loop: start=0, step=1, limit=4
  $region2: #{phde_conv_forward.3} parent=0 // loop_pre_header
    _
  $region3: #{phde_conv_forward.3} parent=0 // loop_header
    %s13 = sphi 0, %s17
    %p14 = scmp.ge.s32.totalorder %s13, 4
    %s20 = sphi 0, %s32
    %s21 = sphi 0, %s28
    %s22 = sphi 0, %s20
    %s23 = sphi 0, %s21
    %s24 = sphi 0, %s22
    %s25 = sphi 0, %s23
    %s37 = sphi 0, %s39
    %s40 = sphi 0, %s37
    %s41 = sphi 0, %s40
    %s57 = sphi 0, %s41
    %s61 = sphi 0, %s61
    %s63 = sphi 0, %s61
    %s64 = sphi 0, %s63
    %s78 = sphi 0, %s64
    %s82 = sphi 0, %s82
    %s84 = sphi 0, %s82
    %s85 = sphi 0, %s84
    %s99 = sphi 0, %s85
    %s103 = sphi 0, %s103
    %s105 = sphi 0, %s103
    %s106 = sphi 0, %s105
    %s120 = sphi 0, %s106
    %s124 = sphi 0, %s124
    %s126 = sphi 0, %s124
    %s127 = sphi 0, %s126
    %s141 = sphi 0, %s127
    %s149 = sphi 0, %s151
    %s152 = sphi 0, %s149
    %s153 = sphi 0, %s152
    %s169 = sphi 0, %s153
    %s175 = sphi 0, %s177
    %s178 = sphi 0, %s175
    %s179 = sphi 0, %s178
    %s195 = sphi 0, %s179
  $region4: #{phde_conv_forward.3} parent=0 // loop_header_branch
    %16 = sbr.rel (%p14) target = $region8
  $region5: #{phde_conv_forward.3} parent=0 // loop_body
    %s18 = ssub.s32 %s13, 1
    %s19 = ssub.s32 %s13, 2
    %s26 = sadd.s32 1, %s21
    %p27 = scmp.ge.s32.totalorder %s26, 1
    %s28 = scalar_select %p27, 0, %s26
    %s29 = sadd.s32 1, %s20
    %s30 = scalar_select %p27, %s29, %s20
    %p31 = scmp.ge.s32.totalorder %s30, 2
    %s32 = scalar_select %p31, 0, %s30
    %s33 = ssub.s32 %s20, %s32
    %s34 = ssub.s32 %s21, %s28
    %s35 = sor.u32 %s33, %s34
    %p36 = scmp.eq.s32.totalorder %s35, 0
    %s38 = sadd.s32 %s37, 1
    %s39 = scalar_select %p36, %s37, %s38
    %p42 = pneg %p36
    %p43 = scmp.eq.s32.totalorder %s13, 1
    %p44 = por %p42, %p43
    %p45 = scmp.ne.s32.totalorder %s37, %s40
    %p46 = scmp.eq.s32.totalorder %s13, 0
    %p47 = por %p45, %p46
    %p48 = scmp.ne.s32.totalorder %s37, %s40
    %p49 = scmp.eq.s32.totalorder %s18, 1
    %p50 = por %p48, %p49
    %p51 = scmp.ne.s32.totalorder %s40, %s41
    %p52 = scmp.eq.s32.totalorder %s18, 0
    %p53 = por %p51, %p52
    %p54 = scmp.ne.s32.totalorder %s40, %s41
    %p55 = scmp.eq.s32.totalorder %s19, 1
    %p56 = por %p54, %p55
    %p58 = scmp.ne.s32.totalorder %s41, %s57
    %p59 = scmp.eq.s32.totalorder %s19, 0
    %p60 = por %p58, %p59
    %s62 = sadd.s32 %s61, 1
    %p65 = scmp.eq.s32.totalorder %s13, 1
    %p66 = scmp.ne.s32.totalorder %s61, %s63
    %p67 = scmp.eq.s32.totalorder %s13, 0
    %p68 = por %p66, %p67
    %p69 = scmp.ne.s32.totalorder %s61, %s63
    %p70 = scmp.eq.s32.totalorder %s18, 1
    %p71 = por %p69, %p70
    %p72 = scmp.ne.s32.totalorder %s63, %s64
    %p73 = scmp.eq.s32.totalorder %s18, 0
    %p74 = por %p72, %p73
    %p75 = scmp.ne.s32.totalorder %s63, %s64
    %p76 = scmp.eq.s32.totalorder %s19, 1
    %p77 = por %p75, %p76
    %p79 = scmp.ne.s32.totalorder %s64, %s78
    %p80 = scmp.eq.s32.totalorder %s19, 0
    %p81 = por %p79, %p80
    %s83 = sadd.s32 %s82, 1
    %p86 = scmp.eq.s32.totalorder %s13, 1
    %p87 = scmp.ne.s32.totalorder %s82, %s84
    %p88 = scmp.eq.s32.totalorder %s13, 0
    %p89 = por %p87, %p88
    %p90 = scmp.ne.s32.totalorder %s82, %s84
    %p91 = scmp.eq.s32.totalorder %s18, 1
    %p92 = por %p90, %p91
    %p93 = scmp.ne.s32.totalorder %s84, %s85
    %p94 = scmp.eq.s32.totalorder %s18, 0
    %p95 = por %p93, %p94
    %p96 = scmp.ne.s32.totalorder %s84, %s85
    %p97 = scmp.eq.s32.totalorder %s19, 1
    %p98 = por %p96, %p97
    %p100 = scmp.ne.s32.totalorder %s85, %s99
    %p101 = scmp.eq.s32.totalorder %s19, 0
    %p102 = por %p100, %p101
    %s104 = sadd.s32 %s103, 1
    %p107 = scmp.eq.s32.totalorder %s13, 1
    %p108 = scmp.ne.s32.totalorder %s103, %s105
    %p109 = scmp.eq.s32.totalorder %s13, 0
    %p110 = por %p108, %p109
    %p111 = scmp.ne.s32.totalorder %s103, %s105
    %p112 = scmp.eq.s32.totalorder %s18, 1
    %p113 = por %p111, %p112
    %p114 = scmp.ne.s32.totalorder %s105, %s106
    %p115 = scmp.eq.s32.totalorder %s18, 0
    %p116 = por %p114, %p115
    %p117 = scmp.ne.s32.totalorder %s105, %s106
    %p118 = scmp.eq.s32.totalorder %s19, 1
    %p119 = por %p117, %p118
    %p121 = scmp.ne.s32.totalorder %s106, %s120
    %p122 = scmp.eq.s32.totalorder %s19, 0
    %p123 = por %p121, %p122
    %s125 = sadd.s32 %s124, 1
    %p128 = scmp.eq.s32.totalorder %s13, 1
    %p129 = scmp.ne.s32.totalorder %s124, %s126
    %p130 = scmp.eq.s32.totalorder %s13, 0
    %p131 = por %p129, %p130
    %p132 = scmp.ne.s32.totalorder %s124, %s126
    %p133 = scmp.eq.s32.totalorder %s18, 1
    %p134 = por %p132, %p133
    %p135 = scmp.ne.s32.totalorder %s126, %s127
    %p136 = scmp.eq.s32.totalorder %s18, 0
    %p137 = por %p135, %p136
    %p138 = scmp.ne.s32.totalorder %s126, %s127
    %p139 = scmp.eq.s32.totalorder %s19, 1
    %p140 = por %p138, %p139
    %p142 = scmp.ne.s32.totalorder %s127, %s141
    %p143 = scmp.eq.s32.totalorder %s19, 0
    %p144 = por %p142, %p143
    %s145 = ssub.s32 %s20, %s32
    %s146 = ssub.s32 %s21, %s28
    %s147 = sor.u32 %s145, %s146
    %p148 = scmp.eq.s32.totalorder %s147, 0
    %s150 = sadd.s32 %s149, 1
    %s151 = scalar_select %p148, %s149, %s150
    %p154 = pneg %p148
    %p155 = scmp.eq.s32.totalorder %s13, 1
    %p156 = por %p154, %p155
    %p157 = scmp.ne.s32.totalorder %s149, %s152
    %p158 = scmp.eq.s32.totalorder %s13, 0
    %p159 = por %p157, %p158
    %p160 = scmp.ne.s32.totalorder %s149, %s152
    %p161 = scmp.eq.s32.totalorder %s18, 1
    %p162 = por %p160, %p161
    %p163 = scmp.ne.s32.totalorder %s152, %s153
    %p164 = scmp.eq.s32.totalorder %s18, 0
    %p165 = por %p163, %p164
    %p166 = scmp.ne.s32.totalorder %s152, %s153
    %p167 = scmp.eq.s32.totalorder %s19, 1
    %p168 = por %p166, %p167
    %p170 = scmp.ne.s32.totalorder %s153, %s169
    %p171 = scmp.eq.s32.totalorder %s19, 0
    %p172 = por %p170, %p171
    %s173 = ssub.s32 %s20, %s32
    %p174 = scmp.eq.s32.totalorder %s173, 0
    %s176 = sadd.s32 %s175, 1
    %s177 = scalar_select %p174, %s175, %s176
    %p180 = pneg %p174
    %p181 = scmp.eq.s32.totalorder %s13, 1
    %p182 = por %p180, %p181
    %p183 = scmp.ne.s32.totalorder %s175, %s178
    %p184 = scmp.eq.s32.totalorder %s13, 0
    %p185 = por %p183, %p184
    %p186 = scmp.ne.s32.totalorder %s175, %s178
    %p187 = scmp.eq.s32.totalorder %s18, 1
    %p188 = por %p186, %p187
    %p189 = scmp.ne.s32.totalorder %s178, %s179
    %p190 = scmp.eq.s32.totalorder %s18, 0
    %p191 = por %p189, %p190
    %p192 = scmp.ne.s32.totalorder %s178, %s179
    %p193 = scmp.eq.s32.totalorder %s19, 1
    %p194 = por %p192, %p193
    %p196 = scmp.ne.s32.totalorder %s179, %s195
    %p197 = scmp.eq.s32.totalorder %s19, 0
    %p198 = por %p196, %p197
    %p199 = scmp.le.s32.totalorder 1, %s13
    %p200 = scmp.lt.s32.totalorder %s13, 3
    %p201 = pnand %p199, %p200
    %p202 = pneg %p201
    // Predicated region
    $region9: #{phde_conv_forward.3} parent=5 // pred_check
      _
    $region10: #{phde_conv_forward.3} parent=5 // pred_check_branch
      %204 = sbr.rel (%p201) target = $region12
    $region11: #{phde_conv_forward.3} parent=5 // pred_region
      %s205 = ssub.s32 %s13, 1
      // Predicated region
      $region13: #{phde_conv_forward.3} parent=11 // pred_check
        %p206 = pneg %p74
      $region14: #{phde_conv_forward.3} parent=11 // pred_check_branch
        %208 = sbr.rel (%p206) target = $region16
      $region15: #{phde_conv_forward.3} parent=11 // pred_region
        _
      $region16: #{phde_conv_forward.3} parent=11 // pred_fallthru
        _
      // Predicated region
      $region17: #{phde_conv_forward.3} parent=11 // pred_check
        %p209 = pneg %p95
      $region18: #{phde_conv_forward.3} parent=11 // pred_check_branch
        %211 = sbr.rel (%p209) target = $region20
      $region19: #{phde_conv_forward.3} parent=11 // pred_region
        _
      $region20: #{phde_conv_forward.3} parent=11 // pred_fallthru
        _
      // Predicated region
      $region21: #{phde_conv_forward.3} parent=11 // pred_check
        %p212 = pneg %p116
      $region22: #{phde_conv_forward.3} parent=11 // pred_check_branch
        %214 = sbr.rel (%p212) target = $region24
      $region23: #{phde_conv_forward.3} parent=11 // pred_region
        _
      $region24: #{phde_conv_forward.3} parent=11 // pred_fallthru
        _
      // Predicated region
      $region25: #{phde_conv_forward.3} parent=11 // pred_check
        %p215 = pneg %p137
      $region26: #{phde_conv_forward.3} parent=11 // pred_check_branch
        %217 = sbr.rel (%p215) target = $region28
      $region27: #{phde_conv_forward.3} parent=11 // pred_region
        _
      $region28: #{phde_conv_forward.3} parent=11 // pred_fallthru
        _
    $region12: #{phde_conv_forward.3} parent=5 // pred_fallthru
      _
    %p218 = scmp.lt.s32.totalorder %s13, 2
    // Predicated region
    $region29: #{phde_conv_forward.3} parent=5 // pred_check
      %p219 = pneg %p218
    $region30: #{phde_conv_forward.3} parent=5 // pred_check_branch
      %221 = sbr.rel (%p219) target = $region32
    $region31: #{phde_conv_forward.3} parent=5 // pred_region
      // Predicated region
      $region33: #{phde_conv_forward.3} parent=31 // pred_check
        %p222 = pneg %p47
      $region34: #{phde_conv_forward.3} parent=31 // pred_check_branch
        %224 = sbr.rel (%p222) target = $region36
      $region35: #{phde_conv_forward.3} parent=31 // pred_region
        %s225 = smul.u32 2, %s21
        %p226 = scmp.lt.s32.totalorder %s20, 1
        %s227 = scalar_select %p226, %s20, 1
        %p228 = scmp.lt.s32.totalorder %s225, 1
        %s229 = scalar_select %p228, %s225, 1
        %s230 = smul.addr %s227, 2
        %s231 = sadd.s32 %s229, %s230
        %s232 = smul.addr %s231, 4
        %s233 = scalar_lea.vmem %s0, %s232
        %s234 = smul.u32 2, %s21
      $region36: #{phde_conv_forward.3} parent=31 // pred_fallthru
        _
    $region32: #{phde_conv_forward.3} parent=5 // pred_fallthru
      _
    %p235 = scmp.le.s32.totalorder 1, %s13
    %p236 = scmp.lt.s32.totalorder %s13, 3
    %p237 = pnand %p235, %p236
    %p238 = pneg %p237
    // Predicated region
    $region37: #{phde_conv_forward.3} parent=5 // pred_check
      _
    $region38: #{phde_conv_forward.3} parent=5 // pred_check_branch
      %240 = sbr.rel (%p237) target = $region40
    $region39: #{phde_conv_forward.3} parent=5 // pred_region
      %s241 = ssub.s32 %s13, 1
      %s242 = smul.u32 2, %s23
      %p243 = scmp.lt.s32.totalorder %s22, 1
      %s244 = scalar_select %p243, %s22, 1
      %p245 = scmp.lt.s32.totalorder %s242, 1
      %s246 = scalar_select %p245, %s242, 1
      %s247 = smul.addr %s244, 2
      %s248 = sadd.s32 %s246, %s247
      %s249 = smul.addr %s248, 4
      %s250 = scalar_lea.vmem %s0, %s249
      %p251 = pneg %p53
      %p252 = pneg %p50
      %p253 = pneg %p74
      %p254 = pneg %p71
      %p255 = pneg %p95
      %p256 = pneg %p92
      %p257 = pneg %p116
      %p258 = pneg %p113
      %p259 = pneg %p137
      %p260 = pneg %p134
      %p261 = pneg %p165
      %p262 = pneg %p162
      %s263 = smul.u32 2, %s23
      %p264 = scmp.lt.s32.totalorder %s22, 1
      %s265 = scalar_select %p264, %s22, 1
      %p266 = scmp.lt.s32.totalorder %s263, 1
      %s267 = scalar_select %p266, %s263, 1
      %s268 = smul.addr %s265, 2
      %s269 = sadd.s32 %s267, %s268
      %s270 = scalar_lea.vmem %s5, %s269
      %p271 = pneg %p191
      %p272 = pneg %p188
      %p273 = scmp.lt.s32.totalorder %s22, 1
      %s274 = scalar_select %p273, %s22, 1
      %s275 = smul.addr %s274, 8
      %s276 = scalar_lea.vmem %s6, %s275
      %s277 = smul.u32 2, %s23
      %p278 = scmp.lt.s32.totalorder %s22, 1
      %s279 = scalar_select %p278, %s22, 1
      %p280 = scmp.lt.s32.totalorder %s277, 1
      %s281 = scalar_select %p280, %s277, 1
      %s282 = smul.addr %s279, 2
      %s283 = sadd.s32 %s281, %s282
      %s284 = smul.addr %s283, 4
      %s285 = scalar_lea.vmem %s0, %s284
      %s286 = smul.u32 2, %s23
      %s287 = smul.u32 2, %s23
      %p288 = scmp.lt.s32.totalorder %s22, 1
      %s289 = scalar_select %p288, %s22, 1
      %p290 = scmp.lt.s32.totalorder %s287, 1
      %s291 = scalar_select %p290, %s287, 1
      %s292 = smul.addr %s289, 2
      %s293 = sadd.s32 %s291, %s292
      %s294 = scalar_lea.vmem %s5, %s293
      %s295 = smul.u32 2, %s23
      %p296 = scmp.lt.s32.totalorder %s22, 1
      %s297 = scalar_select %p296, %s22, 1
      %s298 = smul.addr %s297, 8
      %s299 = scalar_lea.vmem %s6, %s298
      %v300 = vld [vmem:[%s285] sm:$0xff]
      %v301 = vld [vmem:[%s1] sm:$0xff]
      %303 = vst [vmem:[#allocation1] ss:$2 sm:$0xff] %v300
      %v304 = vld.sshfl [vmem:[#allocation1] sm:$0xff pattern:$0x75316420]
      %v305 = vld.sshfl [vmem:[#allocation1 + $0x8] sm:$0xff pattern:$0x75316420]
      %vm306 = vcmask 31744
      %v308 = vsel %vm306, %v301, 0
      %vm310 = vcmask 1043456
      %v311 = vsel %vm310, %v304, 0
      %v313 = vsel %vm310, %v305, 0
      %315 = vmatpush.msra.mxu0 0.0
      %316 = vmatpush.msra.mxu0 0.0
      %317 = vmatpush.msra.mxu0 0.0
      %318 = vmatpush.msra.mxu0 0.0
      %319 = vmatpush.msra.mxu0 0.0
      %320 = vmatpush.msra.mxu0 0.0
      %321 = vmatpush.msra.mxu0 0.0
      %322 = vmatpush.msra.mxu0 0.0
      %323 = vmatpush.msra.mxu0 0.0
      %324 = vmatpush.msra.mxu0 0.0
      %325 = vmatpush.msra.mxu0 0.0
      %326 = vmatpush.msra.mxu0 0.0
      %327 = vmatpush.msra.mxu0 0.0
      %328 = vmatpush.msra.mxu0 0.0
      %329 = vmatpush.msra.mxu0 0.0
      %330 = vmatpush.msra.mxu0 %v311
      %331 = vmatmul.f32.gmra.mxu0 %v308
      %v332 = vpop.f32.mrf.mxu0
      %v333 = vadd.f32 0.0, %v332
      %334 = vdwg.mxu0
      %335 = vmatpush.msra.mxu0 0.0
      %336 = vmatpush.msra.mxu0 0.0
      %337 = vmatpush.msra.mxu0 0.0
      %338 = vmatpush.msra.mxu0 0.0
      %339 = vmatpush.msra.mxu0 0.0
      %340 = vmatpush.msra.mxu0 0.0
      %341 = vmatpush.msra.mxu0 0.0
      %342 = vmatpush.msra.mxu0 0.0
      %343 = vmatpush.msra.mxu0 0.0
      %344 = vmatpush.msra.mxu0 0.0
      %345 = vmatpush.msra.mxu0 0.0
      %346 = vmatpush.msra.mxu0 0.0
      %347 = vmatpush.msra.mxu0 0.0
      %348 = vmatpush.msra.mxu0 0.0
      %349 = vmatpush.msra.mxu0 0.0
      %350 = vmatpush.msra.mxu0 %v313
      %351 = vmatmul.f32.gmra.mxu0 %v308
      %v352 = vpop.f32.mrf.mxu0
      %v353 = vadd.f32 0.0, %v352
      %354 = vdwg.mxu0
      %v355 = vld [vmem:[%s2] sm:$0xff]
      %357 = vset.pattern.permute.xlu0 0
      %358 = vperm.xlu0 %357, %v355
      %v359 = vpop.permute.xlu0 %358
      %v361 = vmul.f32 %v333, %v359
      %v362 = vmul.f32 %v353, %v359
      %v363 = vld [vmem:[%s3] sm:$0xff]
      %365 = vset.pattern.permute.xlu0 0
      %366 = vperm.xlu0 %365, %v363
      %v367 = vpop.permute.xlu0 %366
      %v369 = vadd.f32 %v361, %v367
      %v370 = vadd.f32 %v362, %v367
      %v371 = vxor.u32 %v369, 2147483648
      %v372 = vxor.u32 %v370, 2147483648
      %v373 = vmul.f32 %v371, 1.442695
      %v374 = vpow.pop %v373
      %v375 = vmul.f32 %v372, 1.442695
      %v376 = vpow.pop %v375
      %v377 = vadd.f32 %v374, 1.0
      %v378 = vadd.f32 %v376, 1.0
      %v379 = vrcp.pop %v377
      %v380 = vmul.f32 %v377, %v379
      %v381 = vsub.f32 1.0, %v380
      %v382 = vmul.f32 %v379, %v381
      %v383 = vadd.f32 %v379, %v382
      %vm384 = vweird.f32 %v377
      %vm385 = vweird.f32 %v379
      %vm386 = vmor %vm384, %vm385
      %v387 = vsel %vm386, %v379, %v383
      %v388 = vand.u32 2147483647, %v377
      %vm389 = vcmp.eq.f32.partialorder %v388, 8.507059e+37
      %v390 = vand.u32 %v377, 2147483648
      %v391 = vor.u32 1.1754944e-38, %v390
      %v392 = vsel %vm389, %v391, %v387
      %v393 = vmul.f32 1.0, %v392
      %v394 = vrcp.pop %v378
      %v395 = vmul.f32 %v378, %v394
      %v396 = vsub.f32 1.0, %v395
      %v397 = vmul.f32 %v394, %v396
      %v398 = vadd.f32 %v394, %v397
      %vm399 = vweird.f32 %v378
      %vm400 = vweird.f32 %v394
      %vm401 = vmor %vm399, %vm400
      %v402 = vsel %vm401, %v394, %v398
      %v403 = vand.u32 2147483647, %v378
      %vm404 = vcmp.eq.f32.partialorder %v403, 8.507059e+37
      %v405 = vand.u32 %v378, 2147483648
      %v406 = vor.u32 1.1754944e-38, %v405
      %v407 = vsel %vm404, %v406, %v402
      %v408 = vmul.f32 1.0, %v407
      %v409 = vmul.f32 %v369, %v393
      %v410 = vmul.f32 %v370, %v408
      %v411 = vld [vmem:[%s4] sm:$0x1]
      %vm412 = vcmask 64512
      %v414 = vsel %vm412, %v411, 0
      %416 = vmatpush.msra.mxu0 0.0
      %417 = vmatpush.msra.mxu0 0.0
      %418 = vmatpush.msra.mxu0 0.0
      %419 = vmatpush.msra.mxu0 0.0
      %420 = vmatpush.msra.mxu0 0.0
      %421 = vmatpush.msra.mxu0 0.0
      %422 = vmatpush.msra.mxu0 0.0
      %423 = vmatpush.msra.mxu0 0.0
      %424 = vmatpush.msra.mxu0 0.0
      %425 = vmatpush.msra.mxu0 0.0
      %426 = vmatpush.msra.mxu0 0.0
      %427 = vmatpush.msra.mxu0 0.0
      %428 = vmatpush.msra.mxu0 0.0
      %429 = vmatpush.msra.mxu0 0.0
      %430 = vmatpush.msra.mxu0 0.0
      %431 = vmatpush.msra.mxu0 %v409
      %432 = vmatmul.f32.gmra.mxu0 %v414
      %v433 = vpop.f32.mrf.mxu0
      %v434 = vadd.f32 0.0, %v433
      %435 = vdwg.mxu0
      %436 = vmatpush.msra.mxu0 0.0
      %437 = vmatpush.msra.mxu0 0.0
      %438 = vmatpush.msra.mxu0 0.0
      %439 = vmatpush.msra.mxu0 0.0
      %440 = vmatpush.msra.mxu0 0.0
      %441 = vmatpush.msra.mxu0 0.0
      %442 = vmatpush.msra.mxu0 0.0
      %443 = vmatpush.msra.mxu0 0.0
      %444 = vmatpush.msra.mxu0 0.0
      %445 = vmatpush.msra.mxu0 0.0
      %446 = vmatpush.msra.mxu0 0.0
      %447 = vmatpush.msra.mxu0 0.0
      %448 = vmatpush.msra.mxu0 0.0
      %449 = vmatpush.msra.mxu0 0.0
      %450 = vmatpush.msra.mxu0 0.0
      %451 = vmatpush.msra.mxu0 %v410
      %452 = vmatmul.f32.gmra.mxu0 %v414
      %v453 = vpop.f32.mrf.mxu0
      %v454 = vadd.f32 0.0, %v453
      %455 = vdwg.mxu0
      %v458 = vrot.slane %v454, 7
      %vm459 = vcmask 1040384
      %v460 = vsel %vm459, %v434, %v458
      %v462 = vlaneseq
      %vm463 = vcmp.ge.s32.totalorder %v462, 0
      %vm464 = vcmp.lt.s32.totalorder %v462, 256
      %vm465 = vmand %vm463, %vm464
      %466 = vst.msk [vmem:[%s294] sm:$0x3] %vm465, %v460
      %v467 = vadd.f32 %v409, %v410
      %468 = vadd.xlane.f32.xlu0 %v467
      %v469 = vpop.xlane.xlu0 %468
      %p470 = scmp.eq.s32.totalorder %s23, 0
      // Predicated region
      $region41: #{phde_conv_forward.3} parent=39 // pred_check
        %p471 = pneg %p470
      $region42: #{phde_conv_forward.3} parent=39 // pred_check_branch
        %473 = sbr.rel (%p471) target = $region44
      $region43: #{phde_conv_forward.3} parent=39 // pred_region
        %vm474 = vcmask 7168
        %475 = vst.msk [vmem:[#allocation2] sm:$0xff] %vm474, 0.0
      $region44: #{phde_conv_forward.3} parent=39 // pred_fallthru
        _
      %v476 = vld [vmem:[#allocation2] sm:$0xff]
      %v477 = vadd.f32 %v476, %v469
      %vm478 = vcmask 7168
      %479 = vst.msk [vmem:[#allocation2] sm:$0xff] %vm478, %v477
      // Predicated region
      $region45: #{phde_conv_forward.3} parent=39 // pred_check
        %p480 = pneg %p470
      $region46: #{phde_conv_forward.3} parent=39 // pred_check_branch
        %482 = sbr.rel (%p480) target = $region48
      $region47: #{phde_conv_forward.3} parent=39 // pred_region
        %v483 = vld [vmem:[#allocation2] sm:$0xff]
        %484 = vst.msk [vmem:[%s299] sm:$0xff] %vm478, %v483
      $region48: #{phde_conv_forward.3} parent=39 // pred_fallthru
        _
      %s485 = smul.u32 2, %s23
      %p486 = scmp.lt.s32.totalorder %s22, 1
      %s487 = scalar_select %p486, %s22, 1
      %p488 = scmp.lt.s32.totalorder %s485, 1
      %s489 = scalar_select %p488, %s485, 1
      %s490 = smul.addr %s487, 2
      %s491 = sadd.s32 %s489, %s490
      %s492 = scalar_lea.vmem %s5, %s491
      %p493 = scmp.lt.s32.totalorder %s22, 1
      %s494 = scalar_select %p493, %s22, 1
      %s495 = smul.addr %s494, 8
      %s496 = scalar_lea.vmem %s6, %s495
      // Predicated region
      $region49: #{phde_conv_forward.3} parent=39 // pred_check
        %p497 = pneg %p162
      $region50: #{phde_conv_forward.3} parent=39 // pred_check_branch
        %499 = sbr.rel (%p497) target = $region52
      $region51: #{phde_conv_forward.3} parent=39 // pred_region
        %s500 = smul.u32 2, %s23
      $region52: #{phde_conv_forward.3} parent=39 // pred_fallthru
        _
      // Predicated region
      $region53: #{phde_conv_forward.3} parent=39 // pred_check
        %p501 = pneg %p188
      $region54: #{phde_conv_forward.3} parent=39 // pred_check_branch
        %503 = sbr.rel (%p501) target = $region56
      $region55: #{phde_conv_forward.3} parent=39 // pred_region
        _
      $region56: #{phde_conv_forward.3} parent=39 // pred_fallthru
        _
    $region40: #{phde_conv_forward.3} parent=5 // pred_fallthru
      _
    %p504 = scmp.le.s32.totalorder 2, %s13
    // Predicated region
    $region57: #{phde_conv_forward.3} parent=5 // pred_check
      %p505 = pneg %p504
    $region58: #{phde_conv_forward.3} parent=5 // pred_check_branch
      %507 = sbr.rel (%p505) target = $region60
    $region59: #{phde_conv_forward.3} parent=5 // pred_region
      %s508 = ssub.s32 %s13, 2
      // Predicated region
      $region61: #{phde_conv_forward.3} parent=59 // pred_check
        %p509 = pneg %p168
      $region62: #{phde_conv_forward.3} parent=59 // pred_check_branch
        %511 = sbr.rel (%p509) target = $region64
      $region63: #{phde_conv_forward.3} parent=59 // pred_region
        %s512 = smul.u32 2, %s25
        %p513 = scmp.lt.s32.totalorder %s24, 1
        %s514 = scalar_select %p513, %s24, 1
        %p515 = scmp.lt.s32.totalorder %s512, 1
        %s516 = scalar_select %p515, %s512, 1
        %s517 = smul.addr %s514, 2
        %s518 = sadd.s32 %s516, %s517
        %s519 = scalar_lea.vmem %s5, %s518
      $region64: #{phde_conv_forward.3} parent=59 // pred_fallthru
        _
      // Predicated region
      $region65: #{phde_conv_forward.3} parent=59 // pred_check
        %p520 = pneg %p194
      $region66: #{phde_conv_forward.3} parent=59 // pred_check_branch
        %522 = sbr.rel (%p520) target = $region68
      $region67: #{phde_conv_forward.3} parent=59 // pred_region
        %p523 = scmp.lt.s32.totalorder %s24, 1
        %s524 = scalar_select %p523, %s24, 1
        %s525 = smul.addr %s524, 8
        %s526 = scalar_lea.vmem %s6, %s525
      $region68: #{phde_conv_forward.3} parent=59 // pred_fallthru
        _
    $region60: #{phde_conv_forward.3} parent=5 // pred_fallthru
      _
  $region6: #{phde_conv_forward.3} parent=0 // loop_footer
    %s17 = sadd.s32 1, %s13
  $region7: #{phde_conv_forward.3} parent=0 // loop_footer_branch
    %12 = sbr.rel target = $region3
  $region8: #{phde_conv_forward.3} parent=0 // loop_exit
    _

// kernel: phde_conv_forward.5
$region0: #{phde_conv_forward.5}
  #allocation0 [shape = 'u32[]', space=smem, size = 0x4, offset = 0x4, fixed_abs, tag = 'smem constant byte address 0x4 - core index']
  #allocation1 [shape = 'u32[72,128]{1,0:T(1,128)}', space=vmem, size = 0x9000, scoped, tag = 'internal scratch']
  %s0 = inlined_call_operand.vmem [shape: f32[2,4,256], index: 0, kind: input, shape index: {}]
  %s1 = inlined_call_operand.vmem [shape: f32[8,4], index: 1, kind: input, shape index: {}]
  %s2 = inlined_call_operand.vmem [shape: f32[8,1], index: 2, kind: input, shape index: {}]
  %s3 = inlined_call_operand.vmem [shape: f32[8,1], index: 3, kind: input, shape index: {}]
  %s4 = inlined_call_operand.vmem [shape: f32[2,1,256], index: 4, kind: input, shape index: {}]
  %s5 = inlined_call_operand.vmem [shape: f32[2,8,256], index: 5, kind: output, shape index: {}]
  %s6 = sld [smem:[#allocation0]]
  $region53: #{phde_conv_forward.5} parent=0
    _
  %s8 = ssub.s32 1, %s6
  %s9 = scalar_select 0, %s8, %s6
  loop: start=0, step=1, limit=4
  $region2: #{phde_conv_forward.5} parent=0 // loop_pre_header
    _
  $region3: #{phde_conv_forward.5} parent=0 // loop_header
    %s11 = sphi 0, %s15
    %p12 = scmp.ge.s32.totalorder %s11, 4
    %s18 = sphi 0, %s30
    %s19 = sphi 0, %s26
    %s20 = sphi 0, %s18
    %s21 = sphi 0, %s19
    %s22 = sphi 0, %s20
    %s23 = sphi 0, %s21
    %s35 = sphi 0, %s37
    %s38 = sphi 0, %s35
    %s39 = sphi 0, %s38
    %s55 = sphi 0, %s39
    %s59 = sphi 0, %s59
    %s61 = sphi 0, %s59
    %s62 = sphi 0, %s61
    %s76 = sphi 0, %s62
    %s80 = sphi 0, %s80
    %s82 = sphi 0, %s80
    %s83 = sphi 0, %s82
    %s97 = sphi 0, %s83
    %s101 = sphi 0, %s101
    %s103 = sphi 0, %s101
    %s104 = sphi 0, %s103
    %s118 = sphi 0, %s104
    %s126 = sphi 0, %s128
    %s129 = sphi 0, %s126
    %s130 = sphi 0, %s129
    %s146 = sphi 0, %s130
    %s154 = sphi 0, %s156
    %s157 = sphi 0, %s154
    %s158 = sphi 0, %s157
    %s174 = sphi 0, %s158
  $region4: #{phde_conv_forward.5} parent=0 // loop_header_branch
    %14 = sbr.rel (%p12) target = $region8
  $region5: #{phde_conv_forward.5} parent=0 // loop_body
    %s16 = ssub.s32 %s11, 1
    %s17 = ssub.s32 %s11, 2
    %s24 = sadd.s32 1, %s19
    %p25 = scmp.ge.s32.totalorder %s24, 1
    %s26 = scalar_select %p25, 0, %s24
    %s27 = sadd.s32 1, %s18
    %s28 = scalar_select %p25, %s27, %s18
    %p29 = scmp.ge.s32.totalorder %s28, 2
    %s30 = scalar_select %p29, 0, %s28
    %s31 = ssub.s32 %s18, %s30
    %s32 = ssub.s32 %s19, %s26
    %s33 = sor.u32 %s31, %s32
    %p34 = scmp.eq.s32.totalorder %s33, 0
    %s36 = sadd.s32 %s35, 1
    %s37 = scalar_select %p34, %s35, %s36
    %p40 = pneg %p34
    %p41 = scmp.eq.s32.totalorder %s11, 1
    %p42 = por %p40, %p41
    %p43 = scmp.ne.s32.totalorder %s35, %s38
    %p44 = scmp.eq.s32.totalorder %s11, 0
    %p45 = por %p43, %p44
    %p46 = scmp.ne.s32.totalorder %s35, %s38
    %p47 = scmp.eq.s32.totalorder %s16, 1
    %p48 = por %p46, %p47
    %p49 = scmp.ne.s32.totalorder %s38, %s39
    %p50 = scmp.eq.s32.totalorder %s16, 0
    %p51 = por %p49, %p50
    %p52 = scmp.ne.s32.totalorder %s38, %s39
    %p53 = scmp.eq.s32.totalorder %s17, 1
    %p54 = por %p52, %p53
    %p56 = scmp.ne.s32.totalorder %s39, %s55
    %p57 = scmp.eq.s32.totalorder %s17, 0
    %p58 = por %p56, %p57
    %s60 = sadd.s32 %s59, 1
    %p63 = scmp.eq.s32.totalorder %s11, 1
    %p64 = scmp.ne.s32.totalorder %s59, %s61
    %p65 = scmp.eq.s32.totalorder %s11, 0
    %p66 = por %p64, %p65
    %p67 = scmp.ne.s32.totalorder %s59, %s61
    %p68 = scmp.eq.s32.totalorder %s16, 1
    %p69 = por %p67, %p68
    %p70 = scmp.ne.s32.totalorder %s61, %s62
    %p71 = scmp.eq.s32.totalorder %s16, 0
    %p72 = por %p70, %p71
    %p73 = scmp.ne.s32.totalorder %s61, %s62
    %p74 = scmp.eq.s32.totalorder %s17, 1
    %p75 = por %p73, %p74
    %p77 = scmp.ne.s32.totalorder %s62, %s76
    %p78 = scmp.eq.s32.totalorder %s17, 0
    %p79 = por %p77, %p78
    %s81 = sadd.s32 %s80, 1
    %p84 = scmp.eq.s32.totalorder %s11, 1
    %p85 = scmp.ne.s32.totalorder %s80, %s82
    %p86 = scmp.eq.s32.totalorder %s11, 0
    %p87 = por %p85, %p86
    %p88 = scmp.ne.s32.totalorder %s80, %s82
    %p89 = scmp.eq.s32.totalorder %s16, 1
    %p90 = por %p88, %p89
    %p91 = scmp.ne.s32.totalorder %s82, %s83
    %p92 = scmp.eq.s32.totalorder %s16, 0
    %p93 = por %p91, %p92
    %p94 = scmp.ne.s32.totalorder %s82, %s83
    %p95 = scmp.eq.s32.totalorder %s17, 1
    %p96 = por %p94, %p95
    %p98 = scmp.ne.s32.totalorder %s83, %s97
    %p99 = scmp.eq.s32.totalorder %s17, 0
    %p100 = por %p98, %p99
    %s102 = sadd.s32 %s101, 1
    %p105 = scmp.eq.s32.totalorder %s11, 1
    %p106 = scmp.ne.s32.totalorder %s101, %s103
    %p107 = scmp.eq.s32.totalorder %s11, 0
    %p108 = por %p106, %p107
    %p109 = scmp.ne.s32.totalorder %s101, %s103
    %p110 = scmp.eq.s32.totalorder %s16, 1
    %p111 = por %p109, %p110
    %p112 = scmp.ne.s32.totalorder %s103, %s104
    %p113 = scmp.eq.s32.totalorder %s16, 0
    %p114 = por %p112, %p113
    %p115 = scmp.ne.s32.totalorder %s103, %s104
    %p116 = scmp.eq.s32.totalorder %s17, 1
    %p117 = por %p115, %p116
    %p119 = scmp.ne.s32.totalorder %s104, %s118
    %p120 = scmp.eq.s32.totalorder %s17, 0
    %p121 = por %p119, %p120
    %s122 = ssub.s32 %s18, %s30
    %s123 = ssub.s32 %s19, %s26
    %s124 = sor.u32 %s122, %s123
    %p125 = scmp.eq.s32.totalorder %s124, 0
    %s127 = sadd.s32 %s126, 1
    %s128 = scalar_select %p125, %s126, %s127
    %p131 = pneg %p125
    %p132 = scmp.eq.s32.totalorder %s11, 1
    %p133 = por %p131, %p132
    %p134 = scmp.ne.s32.totalorder %s126, %s129
    %p135 = scmp.eq.s32.totalorder %s11, 0
    %p136 = por %p134, %p135
    %p137 = scmp.ne.s32.totalorder %s126, %s129
    %p138 = scmp.eq.s32.totalorder %s16, 1
    %p139 = por %p137, %p138
    %p140 = scmp.ne.s32.totalorder %s129, %s130
    %p141 = scmp.eq.s32.totalorder %s16, 0
    %p142 = por %p140, %p141
    %p143 = scmp.ne.s32.totalorder %s129, %s130
    %p144 = scmp.eq.s32.totalorder %s17, 1
    %p145 = por %p143, %p144
    %p147 = scmp.ne.s32.totalorder %s130, %s146
    %p148 = scmp.eq.s32.totalorder %s17, 0
    %p149 = por %p147, %p148
    %s150 = ssub.s32 %s18, %s30
    %s151 = ssub.s32 %s19, %s26
    %s152 = sor.u32 %s150, %s151
    %p153 = scmp.eq.s32.totalorder %s152, 0
    %s155 = sadd.s32 %s154, 1
    %s156 = scalar_select %p153, %s154, %s155
    %p159 = pneg %p153
    %p160 = scmp.eq.s32.totalorder %s11, 1
    %p161 = por %p159, %p160
    %p162 = scmp.ne.s32.totalorder %s154, %s157
    %p163 = scmp.eq.s32.totalorder %s11, 0
    %p164 = por %p162, %p163
    %p165 = scmp.ne.s32.totalorder %s154, %s157
    %p166 = scmp.eq.s32.totalorder %s16, 1
    %p167 = por %p165, %p166
    %p168 = scmp.ne.s32.totalorder %s157, %s158
    %p169 = scmp.eq.s32.totalorder %s16, 0
    %p170 = por %p168, %p169
    %p171 = scmp.ne.s32.totalorder %s157, %s158
    %p172 = scmp.eq.s32.totalorder %s17, 1
    %p173 = por %p171, %p172
    %p175 = scmp.ne.s32.totalorder %s158, %s174
    %p176 = scmp.eq.s32.totalorder %s17, 0
    %p177 = por %p175, %p176
    %p178 = scmp.le.s32.totalorder 1, %s11
    %p179 = scmp.lt.s32.totalorder %s11, 3
    %p180 = pnand %p178, %p179
    %p181 = pneg %p180
    // Predicated region
    $region9: #{phde_conv_forward.5} parent=5 // pred_check
      _
    $region10: #{phde_conv_forward.5} parent=5 // pred_check_branch
      %183 = sbr.rel (%p180) target = $region12
    $region11: #{phde_conv_forward.5} parent=5 // pred_region
      %s184 = ssub.s32 %s11, 1
      // Predicated region
      $region13: #{phde_conv_forward.5} parent=11 // pred_check
        %p185 = pneg %p72
      $region14: #{phde_conv_forward.5} parent=11 // pred_check_branch
        %187 = sbr.rel (%p185) target = $region16
      $region15: #{phde_conv_forward.5} parent=11 // pred_region
        _
      $region16: #{phde_conv_forward.5} parent=11 // pred_fallthru
        _
      // Predicated region
      $region17: #{phde_conv_forward.5} parent=11 // pred_check
        %p188 = pneg %p93
      $region18: #{phde_conv_forward.5} parent=11 // pred_check_branch
        %190 = sbr.rel (%p188) target = $region20
      $region19: #{phde_conv_forward.5} parent=11 // pred_region
        _
      $region20: #{phde_conv_forward.5} parent=11 // pred_fallthru
        _
      // Predicated region
      $region21: #{phde_conv_forward.5} parent=11 // pred_check
        %p191 = pneg %p114
      $region22: #{phde_conv_forward.5} parent=11 // pred_check_branch
        %193 = sbr.rel (%p191) target = $region24
      $region23: #{phde_conv_forward.5} parent=11 // pred_region
        _
      $region24: #{phde_conv_forward.5} parent=11 // pred_fallthru
        _
    $region12: #{phde_conv_forward.5} parent=5 // pred_fallthru
      _
    %p194 = scmp.lt.s32.totalorder %s11, 2
    // Predicated region
    $region25: #{phde_conv_forward.5} parent=5 // pred_check
      %p195 = pneg %p194
    $region26: #{phde_conv_forward.5} parent=5 // pred_check_branch
      %197 = sbr.rel (%p195) target = $region28
    $region27: #{phde_conv_forward.5} parent=5 // pred_region
      // Predicated region
      $region29: #{phde_conv_forward.5} parent=27 // pred_check
        %p198 = pneg %p45
      $region30: #{phde_conv_forward.5} parent=27 // pred_check_branch
        %200 = sbr.rel (%p198) target = $region32
      $region31: #{phde_conv_forward.5} parent=27 // pred_region
        %s201 = smul.u32 2, %s19
        %p202 = scmp.lt.s32.totalorder %s18, 1
        %s203 = scalar_select %p202, %s18, 1
        %p204 = scmp.lt.s32.totalorder %s201, 1
        %s205 = scalar_select %p204, %s201, 1
        %s206 = smul.addr %s203, 2
        %s207 = sadd.s32 %s205, %s206
        %s208 = smul.addr %s207, 4
        %s209 = scalar_lea.vmem %s0, %s208
        %s210 = smul.u32 2, %s19
      $region32: #{phde_conv_forward.5} parent=27 // pred_fallthru
        _
      // Predicated region
      $region33: #{phde_conv_forward.5} parent=27 // pred_check
        %p211 = pneg %p136
      $region34: #{phde_conv_forward.5} parent=27 // pred_check_branch
        %213 = sbr.rel (%p211) target = $region36
      $region35: #{phde_conv_forward.5} parent=27 // pred_region
        %s214 = smul.u32 2, %s19
        %p215 = scmp.lt.s32.totalorder %s18, 1
        %s216 = scalar_select %p215, %s18, 1
        %p217 = scmp.lt.s32.totalorder %s214, 1
        %s218 = scalar_select %p217, %s214, 1
        %s219 = smul.addr %s216, 2
        %s220 = sadd.s32 %s218, %s219
        %s221 = scalar_lea.vmem %s4, %s220
        %s222 = smul.u32 2, %s19
      $region36: #{phde_conv_forward.5} parent=27 // pred_fallthru
        _
    $region28: #{phde_conv_forward.5} parent=5 // pred_fallthru
      _
    %p223 = scmp.le.s32.totalorder 1, %s11
    %p224 = scmp.lt.s32.totalorder %s11, 3
    %p225 = pnand %p223, %p224
    %p226 = pneg %p225
    // Predicated region
    $region37: #{phde_conv_forward.5} parent=5 // pred_check
      _
    $region38: #{phde_conv_forward.5} parent=5 // pred_check_branch
      %228 = sbr.rel (%p225) target = $region40
    $region39: #{phde_conv_forward.5} parent=5 // pred_region
      %s229 = ssub.s32 %s11, 1
      %s230 = smul.u32 2, %s21
      %p231 = scmp.lt.s32.totalorder %s20, 1
      %s232 = scalar_select %p231, %s20, 1
      %p233 = scmp.lt.s32.totalorder %s230, 1
      %s234 = scalar_select %p233, %s230, 1
      %s235 = smul.addr %s232, 2
      %s236 = sadd.s32 %s234, %s235
      %s237 = smul.addr %s236, 4
      %s238 = scalar_lea.vmem %s0, %s237
      %p239 = pneg %p51
      %p240 = pneg %p48
      %p241 = pneg %p72
      %p242 = pneg %p69
      %p243 = pneg %p93
      %p244 = pneg %p90
      %p245 = pneg %p114
      %p246 = pneg %p111
      %s247 = smul.u32 2, %s21
      %p248 = scmp.lt.s32.totalorder %s20, 1
      %s249 = scalar_select %p248, %s20, 1
      %p250 = scmp.lt.s32.totalorder %s247, 1
      %s251 = scalar_select %p250, %s247, 1
      %s252 = smul.addr %s249, 2
      %s253 = sadd.s32 %s251, %s252
      %s254 = scalar_lea.vmem %s4, %s253
      %p255 = pneg %p142
      %p256 = pneg %p139
      %p257 = pneg %p170
      %p258 = pneg %p167
      %s259 = smul.u32 2, %s21
      %p260 = scmp.lt.s32.totalorder %s20, 1
      %s261 = scalar_select %p260, %s20, 1
      %p262 = scmp.lt.s32.totalorder %s259, 1
      %s263 = scalar_select %p262, %s259, 1
      %s264 = smul.addr %s261, 2
      %s265 = sadd.s32 %s263, %s264
      %s266 = smul.addr %s265, 8
      %s267 = scalar_lea.vmem %s5, %s266
      %s268 = smul.u32 2, %s21
      %p269 = scmp.lt.s32.totalorder %s20, 1
      %s270 = scalar_select %p269, %s20, 1
      %p271 = scmp.lt.s32.totalorder %s268, 1
      %s272 = scalar_select %p271, %s268, 1
      %s273 = smul.addr %s270, 2
      %s274 = sadd.s32 %s272, %s273
      %s275 = smul.addr %s274, 4
      %s276 = scalar_lea.vmem %s0, %s275
      %s277 = smul.u32 2, %s21
      %s278 = smul.u32 2, %s21
      %p279 = scmp.lt.s32.totalorder %s20, 1
      %s280 = scalar_select %p279, %s20, 1
      %p281 = scmp.lt.s32.totalorder %s278, 1
      %s282 = scalar_select %p281, %s278, 1
      %s283 = smul.addr %s280, 2
      %s284 = sadd.s32 %s282, %s283
      %s285 = scalar_lea.vmem %s4, %s284
      %s286 = smul.u32 2, %s21
      %s287 = smul.u32 2, %s21
      %p288 = scmp.lt.s32.totalorder %s20, 1
      %s289 = scalar_select %p288, %s20, 1
      %p290 = scmp.lt.s32.totalorder %s287, 1
      %s291 = scalar_select %p290, %s287, 1
      %s292 = smul.addr %s289, 2
      %s293 = sadd.s32 %s291, %s292
      %s294 = smul.addr %s293, 8
      %s295 = scalar_lea.vmem %s5, %s294
      %s296 = smul.u32 2, %s21
      %v297 = vld [vmem:[%s276] sm:$0xff]
      %v298 = vld [vmem:[%s1] sm:$0xff]
      %300 = vst [vmem:[#allocation1] ss:$2 sm:$0xff] %v297
      %v301 = vld.sshfl [vmem:[#allocation1] sm:$0xff pattern:$0x75316420]
      %v302 = vld.sshfl [vmem:[#allocation1 + $0x8] sm:$0xff pattern:$0x75316420]
      %vm303 = vcmask 31744
      %v305 = vsel %vm303, %v298, 0
      %vm307 = vcmask 1043456
      %v308 = vsel %vm307, %v301, 0
      %v310 = vsel %vm307, %v302, 0
      %312 = vmatpush.msra.mxu0 0.0
      %313 = vmatpush.msra.mxu0 0.0
      %314 = vmatpush.msra.mxu0 0.0
      %315 = vmatpush.msra.mxu0 0.0
      %316 = vmatpush.msra.mxu0 0.0
      %317 = vmatpush.msra.mxu0 0.0
      %318 = vmatpush.msra.mxu0 0.0
      %319 = vmatpush.msra.mxu0 0.0
      %320 = vmatpush.msra.mxu0 0.0
      %321 = vmatpush.msra.mxu0 0.0
      %322 = vmatpush.msra.mxu0 0.0
      %323 = vmatpush.msra.mxu0 0.0
      %324 = vmatpush.msra.mxu0 0.0
      %325 = vmatpush.msra.mxu0 0.0
      %326 = vmatpush.msra.mxu0 0.0
      %327 = vmatpush.msra.mxu0 %v308
      %328 = vmatmul.f32.gmra.mxu0 %v305
      %v329 = vpop.f32.mrf.mxu0
      %v330 = vadd.f32 0.0, %v329
      %331 = vdwg.mxu0
      %332 = vmatpush.msra.mxu0 0.0
      %333 = vmatpush.msra.mxu0 0.0
      %334 = vmatpush.msra.mxu0 0.0
      %335 = vmatpush.msra.mxu0 0.0
      %336 = vmatpush.msra.mxu0 0.0
      %337 = vmatpush.msra.mxu0 0.0
      %338 = vmatpush.msra.mxu0 0.0
      %339 = vmatpush.msra.mxu0 0.0
      %340 = vmatpush.msra.mxu0 0.0
      %341 = vmatpush.msra.mxu0 0.0
      %342 = vmatpush.msra.mxu0 0.0
      %343 = vmatpush.msra.mxu0 0.0
      %344 = vmatpush.msra.mxu0 0.0
      %345 = vmatpush.msra.mxu0 0.0
      %346 = vmatpush.msra.mxu0 0.0
      %347 = vmatpush.msra.mxu0 %v310
      %348 = vmatmul.f32.gmra.mxu0 %v305
      %v349 = vpop.f32.mrf.mxu0
      %v350 = vadd.f32 0.0, %v349
      %351 = vdwg.mxu0
      %v352 = vld [vmem:[%s2] sm:$0xff]
      %354 = vset.pattern.permute.xlu0 0
      %355 = vperm.xlu0 %354, %v352
      %v356 = vpop.permute.xlu0 %355
      %v358 = vmul.f32 %v330, %v356
      %v359 = vmul.f32 %v350, %v356
      %v360 = vld [vmem:[%s3] sm:$0xff]
      %362 = vset.pattern.permute.xlu0 0
      %363 = vperm.xlu0 %362, %v360
      %v364 = vpop.permute.xlu0 %363
      %v366 = vadd.f32 %v358, %v364
      %v367 = vadd.f32 %v359, %v364
      %v368 = vxor.u32 %v366, 2147483648
      %v369 = vxor.u32 %v367, 2147483648
      %v370 = vmul.f32 %v368, 1.442695
      %v371 = vpow.pop %v370
      %v372 = vmul.f32 %v369, 1.442695
      %v373 = vpow.pop %v372
      %v374 = vadd.f32 %v371, 1.0
      %v375 = vadd.f32 %v373, 1.0
      %v376 = vrcp.pop %v374
      %v377 = vmul.f32 %v374, %v376
      %v378 = vsub.f32 1.0, %v377
      %v379 = vmul.f32 %v376, %v378
      %v380 = vadd.f32 %v376, %v379
      %vm381 = vweird.f32 %v374
      %vm382 = vweird.f32 %v376
      %vm383 = vmor %vm381, %vm382
      %v384 = vsel %vm383, %v376, %v380
      %v385 = vand.u32 2147483647, %v374
      %vm386 = vcmp.eq.f32.partialorder %v385, 8.507059e+37
      %v387 = vand.u32 %v374, 2147483648
      %v388 = vor.u32 1.1754944e-38, %v387
      %v389 = vsel %vm386, %v388, %v384
      %v390 = vmul.f32 1.0, %v389
      %v391 = vrcp.pop %v375
      %v392 = vmul.f32 %v375, %v391
      %v393 = vsub.f32 1.0, %v392
      %v394 = vmul.f32 %v391, %v393
      %v395 = vadd.f32 %v391, %v394
      %vm396 = vweird.f32 %v375
      %vm397 = vweird.f32 %v391
      %vm398 = vmor %vm396, %vm397
      %v399 = vsel %vm398, %v391, %v395
      %v400 = vand.u32 2147483647, %v375
      %vm401 = vcmp.eq.f32.partialorder %v400, 8.507059e+37
      %v402 = vand.u32 %v375, 2147483648
      %v403 = vor.u32 1.1754944e-38, %v402
      %v404 = vsel %vm401, %v403, %v399
      %v405 = vmul.f32 1.0, %v404
      %v406 = vmul.f32 %v366, %v390
      %v407 = vmul.f32 %v367, %v405
      %v408 = vld [vmem:[%s285] sm:$0x3]
      %v409 = vadd.f32 %v408, 1.0
      %v411 = vperm.slane %v409, 0
      %v412 = vperm.slane %v409, 1
      %v415 = vmul.f32 %v406, %v411
      %v416 = vmul.f32 %v407, %v412
      %417 = vst [vmem:[%s295] sm:$0xff] %v415
      %418 = vst [vmem:[%s295 + $0x8] sm:$0xff] %v416
      %s419 = smul.u32 2, %s21
      %p420 = scmp.lt.s32.totalorder %s20, 1
      %s421 = scalar_select %p420, %s20, 1
      %p422 = scmp.lt.s32.totalorder %s419, 1
      %s423 = scalar_select %p422, %s419, 1
      %s424 = smul.addr %s421, 2
      %s425 = sadd.s32 %s423, %s424
      %s426 = smul.addr %s425, 8
      %s427 = scalar_lea.vmem %s5, %s426
      // Predicated region
      $region41: #{phde_conv_forward.5} parent=39 // pred_check
        %p428 = pneg %p167
      $region42: #{phde_conv_forward.5} parent=39 // pred_check_branch
        %430 = sbr.rel (%p428) target = $region44
      $region43: #{phde_conv_forward.5} parent=39 // pred_region
        %s431 = smul.u32 2, %s21
      $region44: #{phde_conv_forward.5} parent=39 // pred_fallthru
        _
    $region40: #{phde_conv_forward.5} parent=5 // pred_fallthru
      _
    %p432 = scmp.le.s32.totalorder 2, %s11
    // Predicated region
    $region45: #{phde_conv_forward.5} parent=5 // pred_check
      %p433 = pneg %p432
    $region46: #{phde_conv_forward.5} parent=5 // pred_check_branch
      %435 = sbr.rel (%p433) target = $region48
    $region47: #{phde_conv_forward.5} parent=5 // pred_region
      %s436 = ssub.s32 %s11, 2
      // Predicated region
      $region49: #{phde_conv_forward.5} parent=47 // pred_check
        %p437 = pneg %p173
      $region50: #{phde_conv_forward.5} parent=47 // pred_check_branch
        %439 = sbr.rel (%p437) target = $region52
      $region51: #{phde_conv_forward.5} parent=47 // pred_region
        %s440 = smul.u32 2, %s23
        %p441 = scmp.lt.s32.totalorder %s22, 1
        %s442 = scalar_select %p441, %s22, 1
        %p443 = scmp.lt.s32.totalorder %s440, 1
        %s444 = scalar_select %p443, %s440, 1
        %s445 = smul.addr %s442, 2
        %s446 = sadd.s32 %s444, %s445
        %s447 = smul.addr %s446, 8
        %s448 = scalar_lea.vmem %s5, %s447
      $region52: #{phde_conv_forward.5} parent=47 // pred_fallthru
        _
    $region48: #{phde_conv_forward.5} parent=5 // pred_fallthru
      _
  $region6: #{phde_conv_forward.5} parent=0 // loop_footer
    %s15 = sadd.s32 1, %s11
  $region7: #{phde_conv_forward.5} parent=0 // loop_footer_branch
    %10 = sbr.rel target = $region3
  $region8: #{phde_conv_forward.5} parent=0 // loop_exit
    _

// kernel: phde_conv_forward.4
$region0: #{phde_conv_forward.4}
  #allocation0 [shape = 'u32[]', space=smem, size = 0x4, offset = 0x4, fixed_abs, tag = 'smem constant byte address 0x4 - core index']
  #allocation1 [shape = 'u32[72,128]{1,0:T(1,128)}', space=vmem, size = 0x9000, scoped, tag = 'internal scratch']
  #allocation2 [shape = 'f32[1]{0:T(128)S(6)}', space=smem, size = 0x200, scoped, tag = 'scoped memory for phde_conv_forward.4']
  %s0 = inlined_call_operand.vmem [shape: f32[2], index: 0, kind: input, shape index: {}]
  %s1 = inlined_call_operand.vmem [shape: f32[2], index: 1, kind: input, shape index: {}]
  %s2 = inlined_call_operand.<no memory space> [shape: f32[1], index: 2, kind: input, shape index: {}]
  %s3 = inlined_call_operand.vmem [shape: f32[16,16], index: 3, kind: input, shape index: {}, may-alias: {3,4}]
  %s4 = inlined_call_operand.vmem [shape: f32[16,16], index: 4, kind: input, shape index: {}, may-alias: {3,4}]
  %s5 = inlined_call_operand.vmem [shape: f32[2,16,16], index: 5, kind: input, shape index: {}]
  %s6 = inlined_call_operand.vmem [shape: f32[2,16,16], index: 6, kind: output, shape index: {}]
  %s7 = sld [smem:[#allocation0]]
  $region65: #{phde_conv_forward.4} parent=0
    _
  %s9 = ssub.s32 1, %s7
  %s10 = scalar_select 0, %s9, %s7
  %11 = sst [smem:[#allocation2]] %s2
  $region1: #{phde_conv_forward.4} parent=0
    #allocation3 [shape = 'u8[512]{0}', space=smem, size = 0x200, scoped, tag = 'input window, operand 0, single buffered']
    #allocation4 [shape = 's32[2]{0}', space=sflag, size = 0x8, scoped, tag = 'scoped memory for phde_conv_forward.4']
    #allocation5 [shape = 'u8[512]{0}', space=smem, size = 0x200, scoped, tag = 'input window, operand 1, single buffered']
    #allocation6 [shape = 's32[1]{0}', space=sflag, size = 0x4, scoped, tag = 'scoped memory for phde_conv_forward.4']
    %12 = vsyncpa [#allocation4], 0
    %13 = vsyncpa [#allocation6], 0
    loop: start=0, step=1, limit=4
    $region2: #{phde_conv_forward.4} parent=1 // loop_pre_header
      _
    $region3: #{phde_conv_forward.4} parent=1 // loop_header
      %s15 = sphi 0, %s19
      %p16 = scmp.ge.s32.totalorder %s15, 4
      %s23 = sphi 0, %s23
      %s25 = sphi 0, %s23
      %s26 = sphi 0, %s25
      %s40 = sphi 0, %s26
      %s44 = sphi 0, %s44
      %s46 = sphi 0, %s44
      %s47 = sphi 0, %s46
      %s61 = sphi 0, %s47
      %s65 = sphi 0, %s65
      %s67 = sphi 0, %s65
      %s68 = sphi 0, %s67
      %s82 = sphi 0, %s68
      %s86 = sphi 0, %s86
      %s88 = sphi 0, %s86
      %s89 = sphi 0, %s88
      %s103 = sphi 0, %s89
      %s107 = sphi 0, %s107
      %s109 = sphi 0, %s107
      %s110 = sphi 0, %s109
      %s124 = sphi 0, %s110
      %s130 = sphi 0, %s132
      %s133 = sphi 0, %s130
      %s134 = sphi 0, %s133
      %s150 = sphi 0, %s134
      %s156 = sphi 0, %s158
      %s159 = sphi 0, %s156
      %s160 = sphi 0, %s159
      %s176 = sphi 0, %s160
    $region4: #{phde_conv_forward.4} parent=1 // loop_header_branch
      %18 = sbr.rel (%p16) target = $region8
    $region5: #{phde_conv_forward.4} parent=1 // loop_body
      %s20 = ssub.s32 %s15, 1
      %s21 = ssub.s32 %s15, 2
      %s22 = sadd.s32 %s15, 1
      %s24 = sadd.s32 %s23, 1
      %p27 = scmp.eq.s32.totalorder %s15, 1
      %p28 = scmp.ne.s32.totalorder %s23, %s25
      %p29 = scmp.eq.s32.totalorder %s15, 0
      %p30 = por %p28, %p29
      %p31 = scmp.ne.s32.totalorder %s23, %s25
      %p32 = scmp.eq.s32.totalorder %s20, 1
      %p33 = por %p31, %p32
      %p34 = scmp.ne.s32.totalorder %s25, %s26
      %p35 = scmp.eq.s32.totalorder %s20, 0
      %p36 = por %p34, %p35
      %p37 = scmp.ne.s32.totalorder %s25, %s26
      %p38 = scmp.eq.s32.totalorder %s21, 1
      %p39 = por %p37, %p38
      %p41 = scmp.ne.s32.totalorder %s26, %s40
      %p42 = scmp.eq.s32.totalorder %s21, 0
      %p43 = por %p41, %p42
      %s45 = sadd.s32 %s44, 1
      %p48 = scmp.eq.s32.totalorder %s15, 1
      %p49 = scmp.ne.s32.totalorder %s44, %s46
      %p50 = scmp.eq.s32.totalorder %s15, 0
      %p51 = por %p49, %p50
      %p52 = scmp.ne.s32.totalorder %s44, %s46
      %p53 = scmp.eq.s32.totalorder %s20, 1
      %p54 = por %p52, %p53
      %p55 = scmp.ne.s32.totalorder %s46, %s47
      %p56 = scmp.eq.s32.totalorder %s20, 0
      %p57 = por %p55, %p56
      %p58 = scmp.ne.s32.totalorder %s46, %s47
      %p59 = scmp.eq.s32.totalorder %s21, 1
      %p60 = por %p58, %p59
      %p62 = scmp.ne.s32.totalorder %s47, %s61
      %p63 = scmp.eq.s32.totalorder %s21, 0
      %p64 = por %p62, %p63
      %s66 = sadd.s32 %s65, 1
      %p69 = scmp.eq.s32.totalorder %s15, 1
      %p70 = scmp.ne.s32.totalorder %s65, %s67
      %p71 = scmp.eq.s32.totalorder %s15, 0
      %p72 = por %p70, %p71
      %p73 = scmp.ne.s32.totalorder %s65, %s67
      %p74 = scmp.eq.s32.totalorder %s20, 1
      %p75 = por %p73, %p74
      %p76 = scmp.ne.s32.totalorder %s67, %s68
      %p77 = scmp.eq.s32.totalorder %s20, 0
      %p78 = por %p76, %p77
      %p79 = scmp.ne.s32.totalorder %s67, %s68
      %p80 = scmp.eq.s32.totalorder %s21, 1
      %p81 = por %p79, %p80
      %p83 = scmp.ne.s32.totalorder %s68, %s82
      %p84 = scmp.eq.s32.totalorder %s21, 0
      %p85 = por %p83, %p84
      %s87 = sadd.s32 %s86, 1
      %p90 = scmp.eq.s32.totalorder %s15, 1
      %p91 = scmp.ne.s32.totalorder %s86, %s88
      %p92 = scmp.eq.s32.totalorder %s15, 0
      %p93 = por %p91, %p92
      %p94 = scmp.ne.s32.totalorder %s86, %s88
      %p95 = scmp.eq.s32.totalorder %s20, 1
      %p96 = por %p94, %p95
      %p97 = scmp.ne.s32.totalorder %s88, %s89
      %p98 = scmp.eq.s32.totalorder %s20, 0
      %p99 = por %p97, %p98
      %p100 = scmp.ne.s32.totalorder %s88, %s89
      %p101 = scmp.eq.s32.totalorder %s21, 1
      %p102 = por %p100, %p101
      %p104 = scmp.ne.s32.totalorder %s89, %s103
      %p105 = scmp.eq.s32.totalorder %s21, 0
      %p106 = por %p104, %p105
      %s108 = sadd.s32 %s107, 1
      %p111 = scmp.eq.s32.totalorder %s15, 1
      %p112 = scmp.ne.s32.totalorder %s107, %s109
      %p113 = scmp.eq.s32.totalorder %s15, 0
      %p114 = por %p112, %p113
      %p115 = scmp.ne.s32.totalorder %s107, %s109
      %p116 = scmp.eq.s32.totalorder %s20, 1
      %p117 = por %p115, %p116
      %p118 = scmp.ne.s32.totalorder %s109, %s110
      %p119 = scmp.eq.s32.totalorder %s20, 0
      %p120 = por %p118, %p119
      %p121 = scmp.ne.s32.totalorder %s109, %s110
      %p122 = scmp.eq.s32.totalorder %s21, 1
      %p123 = por %p121, %p122
      %p125 = scmp.ne.s32.totalorder %s110, %s124
      %p126 = scmp.eq.s32.totalorder %s21, 0
      %p127 = por %p125, %p126
      %s128 = ssub.s32 %s15, %s22
      %p129 = scmp.eq.s32.totalorder %s128, 0
      %s131 = sadd.s32 %s130, 1
      %s132 = scalar_select %p129, %s130, %s131
      %p135 = pneg %p129
      %p136 = scmp.eq.s32.totalorder %s15, 1
      %p137 = por %p135, %p136
      %p138 = scmp.ne.s32.totalorder %s130, %s133
      %p139 = scmp.eq.s32.totalorder %s15, 0
      %p140 = por %p138, %p139
      %p141 = scmp.ne.s32.totalorder %s130, %s133
      %p142 = scmp.eq.s32.totalorder %s20, 1
      %p143 = por %p141, %p142
      %p144 = scmp.ne.s32.totalorder %s133, %s134
      %p145 = scmp.eq.s32.totalorder %s20, 0
      %p146 = por %p144, %p145
      %p147 = scmp.ne.s32.totalorder %s133, %s134
      %p148 = scmp.eq.s32.totalorder %s21, 1
      %p149 = por %p147, %p148
      %p151 = scmp.ne.s32.totalorder %s134, %s150
      %p152 = scmp.eq.s32.totalorder %s21, 0
      %p153 = por %p151, %p152
      %s154 = ssub.s32 %s15, %s22
      %p155 = scmp.eq.s32.totalorder %s154, 0
      %s157 = sadd.s32 %s156, 1
      %s158 = scalar_select %p155, %s156, %s157
      %p161 = pneg %p155
      %p162 = scmp.eq.s32.totalorder %s15, 1
      %p163 = por %p161, %p162
      %p164 = scmp.ne.s32.totalorder %s156, %s159
      %p165 = scmp.eq.s32.totalorder %s15, 0
      %p166 = por %p164, %p165
      %p167 = scmp.ne.s32.totalorder %s156, %s159
      %p168 = scmp.eq.s32.totalorder %s20, 1
      %p169 = por %p167, %p168
      %p170 = scmp.ne.s32.totalorder %s159, %s160
      %p171 = scmp.eq.s32.totalorder %s20, 0
      %p172 = por %p170, %p171
      %p173 = scmp.ne.s32.totalorder %s159, %s160
      %p174 = scmp.eq.s32.totalorder %s21, 1
      %p175 = por %p173, %p174
      %p177 = scmp.ne.s32.totalorder %s160, %s176
      %p178 = scmp.eq.s32.totalorder %s21, 0
      %p179 = por %p177, %p178
      %p180 = scmp.le.s32.totalorder 1, %s15
      %p181 = scmp.lt.s32.totalorder %s15, 3
      %p182 = pnand %p180, %p181
      %p183 = pneg %p182
      // Predicated region
      $region9: #{phde_conv_forward.4} parent=5 // pred_check
        _
      $region10: #{phde_conv_forward.4} parent=5 // pred_check_branch
        %185 = sbr.rel (%p182) target = $region12
      $region11: #{phde_conv_forward.4} parent=5 // pred_region
        %s186 = ssub.s32 %s15, 1
        // Predicated region
        $region13: #{phde_conv_forward.4} parent=11 // pred_check
          %p187 = pneg %p36
        $region14: #{phde_conv_forward.4} parent=11 // pred_check_branch
          %189 = sbr.rel (%p187) target = $region16
        $region15: #{phde_conv_forward.4} parent=11 // pred_region
          %191 = vsyncadd [#allocation4], 0
          %s193 = sshll.u32 %s0, 4
          %s194 = int_to_ptr.vmem [resolvable:$true] %s193
          %196 = dma.vmem_to_smem %s194, 16, [#allocation3], [#allocation4]
        $region16: #{phde_conv_forward.4} parent=11 // pred_fallthru
          _
        // Predicated region
        $region17: #{phde_conv_forward.4} parent=11 // pred_check
          %p197 = pneg %p57
        $region18: #{phde_conv_forward.4} parent=11 // pred_check_branch
          %199 = sbr.rel (%p197) target = $region20
        $region19: #{phde_conv_forward.4} parent=11 // pred_region
          %201 = vsyncadd [#allocation6], 0
          %s203 = sshll.u32 %s1, 4
          %s204 = int_to_ptr.vmem [resolvable:$true] %s203
          %206 = dma.vmem_to_smem %s204, 16, [#allocation5], [#allocation6]
        $region20: #{phde_conv_forward.4} parent=11 // pred_fallthru
          _
        // Predicated region
        $region21: #{phde_conv_forward.4} parent=11 // pred_check
          %p207 = pneg %p78
        $region22: #{phde_conv_forward.4} parent=11 // pred_check_branch
          %209 = sbr.rel (%p207) target = $region24
        $region23: #{phde_conv_forward.4} parent=11 // pred_region
          _
        $region24: #{phde_conv_forward.4} parent=11 // pred_fallthru
          _
        // Predicated region
        $region25: #{phde_conv_forward.4} parent=11 // pred_check
          %p210 = pneg %p99
        $region26: #{phde_conv_forward.4} parent=11 // pred_check_branch
          %212 = sbr.rel (%p210) target = $region28
        $region27: #{phde_conv_forward.4} parent=11 // pred_region
          _
        $region28: #{phde_conv_forward.4} parent=11 // pred_fallthru
          _
        // Predicated region
        $region29: #{phde_conv_forward.4} parent=11 // pred_check
          %p213 = pneg %p120
        $region30: #{phde_conv_forward.4} parent=11 // pred_check_branch
          %215 = sbr.rel (%p213) target = $region32
        $region31: #{phde_conv_forward.4} parent=11 // pred_region
          _
        $region32: #{phde_conv_forward.4} parent=11 // pred_fallthru
          _
      $region12: #{phde_conv_forward.4} parent=5 // pred_fallthru
        _
      %p216 = scmp.lt.s32.totalorder %s15, 2
      // Predicated region
      $region33: #{phde_conv_forward.4} parent=5 // pred_check
        %p217 = pneg %p216
      $region34: #{phde_conv_forward.4} parent=5 // pred_check_branch
        %219 = sbr.rel (%p217) target = $region36
      $region35: #{phde_conv_forward.4} parent=5 // pred_region
        // Predicated region
        $region37: #{phde_conv_forward.4} parent=35 // pred_check
          %p220 = pneg %p140
        $region38: #{phde_conv_forward.4} parent=35 // pred_check_branch
          %222 = sbr.rel (%p220) target = $region40
        $region39: #{phde_conv_forward.4} parent=35 // pred_region
          %p223 = scmp.lt.s32.totalorder %s15, 1
          %s224 = scalar_select %p223, %s15, 1
          %s225 = smul.addr %s224, 2
          %s226 = smul.addr %s225, 8
          %s227 = scalar_lea.vmem %s5, %s226
        $region40: #{phde_conv_forward.4} parent=35 // pred_fallthru
          _
      $region36: #{phde_conv_forward.4} parent=5 // pred_fallthru
        _
      %p228 = scmp.le.s32.totalorder 1, %s15
      %p229 = scmp.lt.s32.totalorder %s15, 3
      %p230 = pnand %p228, %p229
      %p231 = pneg %p230
      // Predicated region
      $region41: #{phde_conv_forward.4} parent=5 // pred_check
        _
      $region42: #{phde_conv_forward.4} parent=5 // pred_check_branch
        %233 = sbr.rel (%p230) target = $region44
      $region43: #{phde_conv_forward.4} parent=5 // pred_region
        %s234 = ssub.s32 %s15, 1
        // Predicated region
        $region45: #{phde_conv_forward.4} parent=43 // pred_check
          %p235 = pneg %p36
        $region46: #{phde_conv_forward.4} parent=43 // pred_check_branch
          %237 = sbr.rel (%p235) target = $region48
        $region47: #{phde_conv_forward.4} parent=43 // pred_region
          %239 = dma.done [#allocation4], 16
        $region48: #{phde_conv_forward.4} parent=43 // pred_fallthru
          _
        // Predicated region
        $region49: #{phde_conv_forward.4} parent=43 // pred_check
          %p240 = pneg %p57
        $region50: #{phde_conv_forward.4} parent=43 // pred_check_branch
          %242 = sbr.rel (%p240) target = $region52
        $region51: #{phde_conv_forward.4} parent=43 // pred_region
          %244 = dma.done [#allocation6], 16
        $region52: #{phde_conv_forward.4} parent=43 // pred_fallthru
          _
        %245 = sfence
        %p246 = pneg %p36
        %p247 = pneg %p33
        %p248 = pneg %p57
        %p249 = pneg %p54
        %p250 = pneg %p78
        %p251 = pneg %p75
        %p252 = pneg %p99
        %p253 = pneg %p96
        %p254 = pneg %p120
        %p255 = pneg %p117
        %p256 = scmp.lt.s32.totalorder %s20, 1
        %s257 = scalar_select %p256, %s20, 1
        %s258 = smul.addr %s257, 2
        %s259 = smul.addr %s258, 8
        %s260 = scalar_lea.vmem %s5, %s259
        %p261 = pneg %p146
        %p262 = pneg %p143
        %p263 = pneg %p172
        %p264 = pneg %p169
        %p265 = scmp.lt.s32.totalorder %s20, 1
        %s266 = scalar_select %p265, %s20, 1
        %s267 = smul.addr %s266, 2
        %s268 = smul.addr %s267, 8
        %s269 = scalar_lea.vmem %s6, %s268
        %p270 = scmp.lt.s32.totalorder %s20, 1
        %s271 = scalar_select %p270, %s20, 1
        %s272 = smul.addr %s271, 2
        %s273 = smul.addr %s272, 8
        %s274 = scalar_lea.vmem %s5, %s273
        %p275 = scmp.lt.s32.totalorder %s20, 1
        %s276 = scalar_select %p275, %s20, 1
        %s277 = smul.addr %s276, 2
        %s278 = smul.addr %s277, 8
        %s279 = scalar_lea.vmem %s6, %s278
        %v280 = vld [vmem:[%s274] sm:$0xff]
        %v281 = vld [vmem:[%s274 + $0x8] sm:$0xff]
        %v282 = vld [vmem:[%s3] sm:$0xff]
        %v283 = vld [vmem:[%s3 + $0x8] sm:$0xff]
        %v284 = vld [vmem:[%s4] sm:$0xff]
        %v285 = vld [vmem:[%s4 + $0x8] sm:$0xff]
        %vm286 = vcmask 130048
        %v288 = vsel %vm286, %v280, 0
        %v291 = vsel %vm286, %v281, 0
        %293 = vmatpush.msra.mxu0 0.0
        %294 = vmatpush.msra.mxu0 0.0
        %295 = vmatpush.msra.mxu0 0.0
        %296 = vmatpush.msra.mxu0 0.0
        %297 = vmatpush.msra.mxu0 0.0
        %298 = vmatpush.msra.mxu0 0.0
        %299 = vmatpush.msra.mxu0 0.0
        %300 = vmatpush.msra.mxu0 0.0
        %301 = vmatpush.msra.mxu0 0.0
        %302 = vmatpush.msra.mxu0 0.0
        %303 = vmatpush.msra.mxu0 0.0
        %304 = vmatpush.msra.mxu0 0.0
        %305 = vmatpush.msra.mxu0 0.0
        %306 = vmatpush.msra.mxu0 0.0
        %307 = vmatpush.msra.mxu0 %v285
        %308 = vmatpush.msra.mxu0 %v284
        %309 = vmatmul.f32.gmra.mxu0 %v288
        %v310 = vpop.f32.mrf.mxu0
        %v311 = vadd.f32 0.0, %v310
        %312 = vmatmul.f32.gmra.mxu0 %v291
        %v313 = vpop.f32.mrf.mxu0
        %v314 = vadd.f32 0.0, %v313
        %315 = vdwg.mxu0
        %v317 = vsel %vm286, %v282, 0
        %v320 = vsel %vm286, %v283, 0
        %322 = vmatpush.msra.mxu0 0.0
        %323 = vmatpush.msra.mxu0 0.0
        %324 = vmatpush.msra.mxu0 0.0
        %325 = vmatpush.msra.mxu0 0.0
        %326 = vmatpush.msra.mxu0 0.0
        %327 = vmatpush.msra.mxu0 0.0
        %328 = vmatpush.msra.mxu0 0.0
        %329 = vmatpush.msra.mxu0 0.0
        %330 = vmatpush.msra.mxu0 0.0
        %331 = vmatpush.msra.mxu0 0.0
        %332 = vmatpush.msra.mxu0 0.0
        %333 = vmatpush.msra.mxu0 0.0
        %334 = vmatpush.msra.mxu0 0.0
        %335 = vmatpush.msra.mxu0 0.0
        %336 = vmatpush.msra.mxu0 %v281
        %337 = vmatpush.msra.mxu0 %v280
        %338 = vmatmul.f32.gmra.mxu0 %v317
        %v339 = vpop.f32.mrf.mxu0
        %v340 = vadd.f32 %v311, %v339
        %341 = vmatmul.f32.gmra.mxu0 %v320
        %v342 = vpop.f32.mrf.mxu0
        %v343 = vadd.f32 %v314, %v342
        %344 = vdwg.mxu0
        %v346 = vsel %vm286, %v340, 0
        %v349 = vsel %vm286, %v343, 0
        %351 = vmatpush.msra.mxu0 0.0
        %352 = vmatpush.msra.mxu0 0.0
        %353 = vmatpush.msra.mxu0 0.0
        %354 = vmatpush.msra.mxu0 0.0
        %355 = vmatpush.msra.mxu0 0.0
        %356 = vmatpush.msra.mxu0 0.0
        %357 = vmatpush.msra.mxu0 0.0
        %358 = vmatpush.msra.mxu0 0.0
        %359 = vmatpush.msra.mxu0 0.0
        %360 = vmatpush.msra.mxu0 0.0
        %361 = vmatpush.msra.mxu0 0.0
        %362 = vmatpush.msra.mxu0 0.0
        %363 = vmatpush.msra.mxu0 0.0
        %364 = vmatpush.msra.mxu0 0.0
        %365 = vmatpush.msra.mxu0 %v285
        %366 = vmatpush.msra.mxu0 %v284
        %367 = vmatmul.f32.gmra.mxu0 %v346
        %v368 = vpop.f32.mrf.mxu0
        %v369 = vadd.f32 0.0, %v368
        %370 = vmatmul.f32.gmra.mxu0 %v349
        %v371 = vpop.f32.mrf.mxu0
        %v372 = vadd.f32 0.0, %v371
        %373 = vdwg.mxu0
        %374 = vmatpush.msra.mxu0 0.0
        %375 = vmatpush.msra.mxu0 0.0
        %376 = vmatpush.msra.mxu0 0.0
        %377 = vmatpush.msra.mxu0 0.0
        %378 = vmatpush.msra.mxu0 0.0
        %379 = vmatpush.msra.mxu0 0.0
        %380 = vmatpush.msra.mxu0 0.0
        %381 = vmatpush.msra.mxu0 0.0
        %382 = vmatpush.msra.mxu0 0.0
        %383 = vmatpush.msra.mxu0 0.0
        %384 = vmatpush.msra.mxu0 0.0
        %385 = vmatpush.msra.mxu0 0.0
        %386 = vmatpush.msra.mxu0 0.0
        %387 = vmatpush.msra.mxu0 0.0
        %388 = vmatpush.msra.mxu0 %v343
        %389 = vmatpush.msra.mxu0 %v340
        %390 = vmatmul.f32.gmra.mxu0 %v317
        %v391 = vpop.f32.mrf.mxu0
        %v392 = vadd.f32 %v369, %v391
        %393 = vmatmul.f32.gmra.mxu0 %v320
        %v394 = vpop.f32.mrf.mxu0
        %v395 = vadd.f32 %v372, %v394
        %396 = vdwg.mxu0
        %s397 = sld [smem:[#allocation3 + %s20]]
        %v398 = vstv %s397
        %v399 = vmul.f32 %v398, %v340
        %v400 = vmul.f32 %v398, %v343
        %s401 = sld [smem:[#allocation5 + %s20]]
        %v402 = vstv %s401
        %v403 = vmul.f32 %v402, %v392
        %v404 = vmul.f32 %v402, %v395
        %v405 = vadd.f32 %v399, %v403
        %v406 = vadd.f32 %v400, %v404
        %s407 = sld [smem:[#allocation2]]
        %v408 = vstv %s407
        %v409 = vmul.f32 %v408, %v405
        %v410 = vmul.f32 %v408, %v406
        %v411 = vxor.u32 %v409, 2147483648
        %v412 = vxor.u32 %v410, 2147483648
        %v413 = vmul.f32 %v411, 1.442695
        %v414 = vpow.pop %v413
        %v415 = vmul.f32 %v412, 1.442695
        %v416 = vpow.pop %v415
        %v417 = vadd.f32 %v414, 1.0
        %v418 = vadd.f32 %v416, 1.0
        %v419 = vrcp.pop %v417
        %v420 = vmul.f32 %v417, %v419
        %v421 = vsub.f32 1.0, %v420
        %v422 = vmul.f32 %v419, %v421
        %v423 = vadd.f32 %v419, %v422
        %vm424 = vweird.f32 %v417
        %vm425 = vweird.f32 %v419
        %vm426 = vmor %vm424, %vm425
        %v427 = vsel %vm426, %v419, %v423
        %v428 = vand.u32 2147483647, %v417
        %vm429 = vcmp.eq.f32.partialorder %v428, 8.507059e+37
        %v430 = vand.u32 %v417, 2147483648
        %v431 = vor.u32 1.1754944e-38, %v430
        %v432 = vsel %vm429, %v431, %v427
        %v433 = vmul.f32 1.0, %v432
        %v434 = vrcp.pop %v418
        %v435 = vmul.f32 %v418, %v434
        %v436 = vsub.f32 1.0, %v435
        %v437 = vmul.f32 %v434, %v436
        %v438 = vadd.f32 %v434, %v437
        %vm439 = vweird.f32 %v418
        %vm440 = vweird.f32 %v434
        %vm441 = vmor %vm439, %vm440
        %v442 = vsel %vm441, %v434, %v438
        %v443 = vand.u32 2147483647, %v418
        %vm444 = vcmp.eq.f32.partialorder %v443, 8.507059e+37
        %v445 = vand.u32 %v418, 2147483648
        %v446 = vor.u32 1.1754944e-38, %v445
        %v447 = vsel %vm444, %v446, %v442
        %v448 = vmul.f32 1.0, %v447
        %449 = vst.msk [vmem:[%s279] sm:$0xff] %vm286, %v433
        %450 = vst.msk [vmem:[%s279 + $0x8] sm:$0xff] %vm286, %v448
        %p451 = scmp.lt.s32.totalorder %s20, 1
        %s452 = scalar_select %p451, %s20, 1
        %s453 = smul.addr %s452, 2
        %s454 = smul.addr %s453, 8
        %s455 = scalar_lea.vmem %s6, %s454
        // Predicated region
        $region53: #{phde_conv_forward.4} parent=43 // pred_check
          %p456 = pneg %p169
        $region54: #{phde_conv_forward.4} parent=43 // pred_check_branch
          %458 = sbr.rel (%p456) target = $region56
        $region55: #{phde_conv_forward.4} parent=43 // pred_region
          _
        $region56: #{phde_conv_forward.4} parent=43 // pred_fallthru
          _
      $region44: #{phde_conv_forward.4} parent=5 // pred_fallthru
        _
      %p459 = scmp.le.s32.totalorder 2, %s15
      // Predicated region
      $region57: #{phde_conv_forward.4} parent=5 // pred_check
        %p460 = pneg %p459
      $region58: #{phde_conv_forward.4} parent=5 // pred_check_branch
        %462 = sbr.rel (%p460) target = $region60
      $region59: #{phde_conv_forward.4} parent=5 // pred_region
        %s463 = ssub.s32 %s15, 2
        // Predicated region
        $region61: #{phde_conv_forward.4} parent=59 // pred_check
          %p464 = pneg %p175
        $region62: #{phde_conv_forward.4} parent=59 // pred_check_branch
          %466 = sbr.rel (%p464) target = $region64
        $region63: #{phde_conv_forward.4} parent=59 // pred_region
          %p467 = scmp.lt.s32.totalorder %s21, 1
          %s468 = scalar_select %p467, %s21, 1
          %s469 = smul.addr %s468, 2
          %s470 = smul.addr %s469, 8
          %s471 = scalar_lea.vmem %s6, %s470
        $region64: #{phde_conv_forward.4} parent=59 // pred_fallthru
          _
      $region60: #{phde_conv_forward.4} parent=5 // pred_fallthru
        _
    $region6: #{phde_conv_forward.4} parent=1 // loop_footer
      %s19 = sadd.s32 1, %s15
    $region7: #{phde_conv_forward.4} parent=1 // loop_footer_branch
      %14 = sbr.rel target = $region3
    $region8: #{phde_conv_forward.4} parent=1 // loop_exit
      _
    %472 = vsyncpa [#allocation4], 1
    %s473 = scalar_lea.sflag [#allocation4], 1
    %474 = vsyncpa %s473, 1
    %475 = vsyncpa [#allocation6], 1

</llo_original>
